<compile_context>
chip_gen: v7x
topology: tpu7x:2x2x1
jax: 0.10.0
libtpu: 0.0.40
codegen_flags: <defaults>
</compile_context>

<pallas_src>
import jax
import jax.numpy as jnp
import numpy as np
from jax.experimental import pallas as pl
from jax.experimental.pallas import tpu as pltpu


# ----------------------------------------------------------------------------
# Pallas kernel
# ----------------------------------------------------------------------------
# Row indices inside the packed (rows, lanes) f32 bias / LayerNorm table.
(R_GIN, R_BIN, R_GSL, R_BSL, R_GFF, R_BFF,
 R_BQ, R_BKV, R_BGRU, R_B1, R_B2) = range(11)
NUM_VEC_ROWS = 11


def _make_slot_attention_kernel(bb, n, s, d, h, iters, eps, ln_eps=1e-5):
    """bb: batches per grid step, n: tokens, s: slots, d: feature dim, h: MLP hidden."""
    f32 = jnp.float32
    bf16 = jnp.bfloat16

    def kernel(inp_ref, slots0_ref, vecs_ref,
               wq_ref, wkv_ref, wgru_ref, w1_ref, w2_ref,
               out_ref):
        def ln(x, g, b):
            m = jnp.mean(x, axis=-1, keepdims=True)
            var = jnp.mean((x - m) ** 2, axis=-1, keepdims=True)
            return (x - m) * jax.lax.rsqrt(var + ln_eps) * g + b

        def mm(a, w):   # activations f32 -> bf16, weights already bf16, f32 accumulation
            return jnp.dot(a.astype(bf16), w, preferred_element_type=f32)

        # ---- hoisted, loop-invariant loads ----------------------------------
        vecs = vecs_ref[...]                          # (11, lanes) f32
        gin, bin_ = vecs[R_GIN:R_GIN + 1, :d], vecs[R_BIN:R_BIN + 1, :d]
        gsl, bsl = vecs[R_GSL:R_GSL + 1, :d], vecs[R_BSL:R_BSL + 1, :d]
        gff, bff = vecs[R_GFF:R_GFF + 1, :d], vecs[R_BFF:R_BFF + 1, :d]
        bq = vecs[R_BQ:R_BQ + 1, :d]                  # scale already baked in
        bkv = vecs[R_BKV:R_BKV + 1, :2 * d]
        bgru = vecs[R_BGRU:R_BGRU + 1, :4 * d]        # [bir+bhr | biz+bhz | binn | bhn]
        b1 = vecs[R_B1:R_B1 + 1, :h]
        b2 = vecs[R_B2:R_B2 + 1, :d]
        wq, wkv = wq_ref[...], wkv_ref[...]           # bf16
        wgru = wgru_ref[...]                          # bf16 (2d, 4d)
        w1, w2 = w1_ref[...], w2_ref[...]             # bf16

        # ---- norm_input + fused k|v projection (once, outside the loop) -----
        x = ln(inp_ref[...], gin, bin_)               # (bb*n, d) f32, no reshape needed
        kv = mm(x, wkv) + bkv                         # (bb*n, 2d) f32
        k = kv[:, :d]
        v = kv[:, d:]
        # hoist the transpose: every iteration then does a plain (s,d)x(d,n) MXU matmul
        kt_b = jnp.swapaxes(k.reshape(bb, n, d), 1, 2).astype(bf16)   # (bb, d, n)
        v_b = v.reshape(bb, n, d).astype(bf16)                        # (bb, n, d)

        slots = slots0_ref[...].astype(f32)           # (bb*s, d)

        for _ in range(iters):                        # small static unroll
            h_prev = slots

            # q projection (scale baked into wq/bq in the wrapper)
            q = mm(ln(slots, gsl, bsl), wq) + bq                       # (bb*s, d)
            dots = jnp.einsum('bid,bdj->bij',
                              q.reshape(bb, s, d).astype(bf16), kt_b,
                              preferred_element_type=f32)              # (bb, s, n)

            # softmax over the SLOT axis (torch softmax(dim=1)), then eps + token renorm
            dots = dots - jnp.max(dots, axis=1, keepdims=True)
            e = jnp.exp(dots)
            attn = e * pl.reciprocal(jnp.sum(e, axis=1, keepdims=True),
                                     approx=True) + eps
            attn = attn * pl.reciprocal(jnp.sum(attn, axis=-1, keepdims=True),
                                        approx=True)

            updates = jnp.einsum('bij,bjd->bid', attn.astype(bf16), v_b,
                                 preferred_element_type=f32)           # (bb, s, d)
            updates = updates.reshape(bb * s, d)

            # ---- GRUCell(updates, h_prev): single fused gate matmul ----------
            uh = jnp.concatenate([updates, h_prev], axis=-1)           # (bb*s, 2d)
            g = mm(uh, wgru) + bgru                                    # (bb*s, 4d)
            r = jax.nn.sigmoid(g[:, :d])
            z = jax.nn.sigmoid(g[:, d:2 * d])
            ng = jnp.tanh(g[:, 2 * d:3 * d] + r * g[:, 3 * d:])
            slots = (1.0 - z) * ng + z * h_prev

            # ---- residual MLP -------------------------------------------------
            sf = ln(slots, gff, bff)
            hid = jnp.maximum(mm(sf, w1) + b1, 0.0)
            slots = slots + mm(hid, w2) + b2

        out_ref[...] = slots.astype(out_ref.dtype)

    return kernel


# ----------------------------------------------------------------------------
# Parameter packing (wrapper-side, outside the kernel)
# ----------------------------------------------------------------------------
def _pack_params(P, d, scale):
    (gin, bin_, gsl, bsl, gff, bff,
     wq, bq, wk, bk, wv, bv,
     wir, wiz, winn, whr, whz, whn,
     bir, biz, binn, bhr, bhz, bhn,
     w1, b1, w2, b2) = P

    hidden = w1.shape[1]
    lanes = max(128, hidden, 4 * d)

    def row(x):
        x = jnp.asarray(x, jnp.float32).reshape(1, -1)
        return jnp.pad(x, ((0, 0), (0, lanes - x.shape[-1])))

    vecs = jnp.concatenate([
        row(gin), row(bin_), row(gsl), row(bsl), row(gff), row(bff),
        row(bq * scale),                                     # scale baked in
        row(jnp.concatenate([bk, bv], axis=-1)),
        row(jnp.concatenate([bir + bhr, biz + bhz, binn, bhn], axis=-1)),
        row(b1), row(b2),
    ], axis=0)                                               # (11, lanes) f32

    bf16 = jnp.bfloat16
    wq_s = (wq * scale).astype(bf16)                         # (d, d)
    wkv = jnp.concatenate([wk, wv], axis=1).astype(bf16)     # (d, 2d)

    # Fused GRU gate matrix: [u | h] @ wgru = [u@Wir+h@Whr | u@Wiz+h@Whz | u@Win | h@Whn]
    zeros_d = jnp.zeros((d, d), jnp.float32)
    wgru = jnp.concatenate([
        jnp.concatenate([wir, wiz, winn, zeros_d], axis=1),
        jnp.concatenate([whr, whz, zeros_d, whn], axis=1),
    ], axis=0).astype(bf16)                                  # (2d, 4d)

    packed = [vecs, wq_s, wkv, wgru, w1.astype(bf16), w2.astype(bf16)]
    return packed, hidden


# ----------------------------------------------------------------------------
# Wrapper
# ----------------------------------------------------------------------------
def slot_attention_pallas(inputs, slots_init, params, *, iters, eps, scale,
                          batch_block=None):
    """inputs: (B, N, D) f32; slots_init: (B, S, D) f32; params: ordered list."""
    b, n, d = inputs.shape
    _, n_s, _ = slots_init.shape

    # Fold the whole batch into one grid step by default (v5e/v6e: 1 TensorCore).
    # On v7x pass batch_block = ceil(B/2) to keep a 2-long parallel axis for its 2 TCs.
    if batch_block is None:
        batch_block = b
    assert b % batch_block == 0
    num_blocks = b // batch_block
    if num_blocks > 1:
        # sublane constraint on the tiled slot slab when the grid has >1 step
        assert (batch_block * n_s) % 8 == 0 and (batch_block * n) % 8 == 0

    packed, hidden = _pack_params(params, d, scale)
    kernel = _make_slot_attention_kernel(batch_block, n, n_s, d, hidden, iters, eps)

    # Flattened 2-D presentation (free metadata reshapes on the wrapper side) so the
    # kernel never has to relayout for the projection / GRU / MLP path.
    inputs2d = inputs.reshape(b * n, d)
    slots2d = slots_init.reshape(b * n_s, d)

    def full_spec(shape):
        nd = len(shape)
        return pl.BlockSpec(shape, lambda i, _nd=nd: (0,) * _nd)

    in_specs = [
        pl.BlockSpec((batch_block * n, d), lambda i: (i, 0)),
        pl.BlockSpec((batch_block * n_s, d), lambda i: (i, 0)),
    ] + [full_spec(p.shape) for p in packed]

    grid_spec = pltpu.PrefetchScalarGridSpec(
        num_scalar_prefetch=0,
        grid=(num_blocks,),
        in_specs=in_specs,
        out_specs=pl.BlockSpec((batch_block * n_s, d), lambda i: (i, 0)),
    )

    out2d = pl.pallas_call(
        kernel,
        out_shape=jax.ShapeDtypeStruct((b * n_s, d), jnp.float32),
        grid_spec=grid_spec,
        compiler_params=pltpu.CompilerParams(
            dimension_semantics=("parallel",),
            vmem_limit_bytes=32 * 1024 * 1024),
    )(inputs2d, slots2d, *packed)

    return out2d.reshape(b, n_s, d)


# ----------------------------------------------------------------------------
# Pure-JAX f32 reference (mirrors the PyTorch forward) for a sanity check
# ----------------------------------------------------------------------------
def slot_attention_ref(inputs, slots_init, P, *, iters, eps, scale, ln_eps=1e-5):
    (gin, bin_, gsl, bsl, gff, bff,
     wq, bq, wk, bk, wv, bv,
     wir, wiz, winn, whr, whz, whn,
     bir, biz, binn, bhr, bhz, bhn,
     w1, b1, w2, b2) = P

    def ln(x, g, b):
        m = jnp.mean(x, axis=-1, keepdims=True)
        var = jnp.mean((x - m) ** 2, axis=-1, keepdims=True)
        return (x - m) * jax.lax.rsqrt(var + ln_eps) * g + b

    x = ln(inputs, gin, bin_)
    k = x @ wk + bk
    v = x @ wv + bv
    slots = slots_init
    for _ in range(iters):
        slots_prev = slots
        s = ln(slots, gsl, bsl)
        q = s @ wq + bq
        dots = jnp.einsum('bid,bjd->bij', q, k) * scale
        attn = jax.nn.softmax(dots, axis=1) + eps
        attn = attn / jnp.sum(attn, axis=-1, keepdims=True)
        updates = jnp.einsum('bjd,bij->bid', v, attn)
        h = slots_prev
        r = jax.nn.sigmoid(updates @ wir + bir + h @ whr + bhr)
        z = jax.nn.sigmoid(updates @ wiz + biz + h @ whz + bhz)
        ng = jnp.tanh(updates @ winn + binn + r * (h @ whn + bhn))
        slots = (1.0 - z) * ng + z * h
        sf = ln(slots, gff, bff)
        slots = slots + jnp.maximum(sf @ w1 + b1, 0.0) @ w2 + b2
    return slots


# ----------------------------------------------------------------------------
if __name__ == "__main__":
    # Small shapes consistent with the module's forward.
    B, N, D = 2, 16, 32          # batch, tokens, feature dim
    NUM_SLOTS = 4
    ITERS = 3
    EPS = 1e-8
    HIDDEN = max(D, 128)
    SCALE = D ** (-0.5)

    key = jax.random.PRNGKey(0)
    keys = jax.random.split(key, 40)
    ki = iter(keys)

    def rand(shape, scale=0.1):
        w = (scale * jax.random.normal(next(ki), shape)).astype(jnp.float32)
        # Make the weights exactly bf16-representable so the kernel's bf16 weight
        # cast is lossless and the f32 reference stays a tight correctness oracle.
        return w.astype(jnp.bfloat16).astype(jnp.float32)

    # Inputs
    inputs = jax.random.normal(next(ki), (B, N, D), dtype=jnp.float32)

    # slots_mu / slots_logsigma -> sampled slot initialization (done in JAX glue,
    # mirrors the torch.randn sampling in the PyTorch forward)
    slots_mu = jax.random.normal(next(ki), (1, 1, D), dtype=jnp.float32)
    slots_logsigma = rand((1, 1, D), scale=0.1)   # deterministic stand-in for xavier init
    noise = jax.random.normal(next(ki), (B, NUM_SLOTS, D), dtype=jnp.float32)
    slots_init = slots_mu + jnp.exp(slots_logsigma) * noise   # (B, S, D)

    # Parameters (Linear weights pre-transposed so kernel does x @ W + b).
    gin, bin_ = jnp.ones((1, D), jnp.float32), jnp.zeros((1, D), jnp.float32)
    gsl, bsl = jnp.ones((1, D), jnp.float32), jnp.zeros((1, D), jnp.float32)
    gff, bff = jnp.ones((1, D), jnp.float32), jnp.zeros((1, D), jnp.float32)

    wq, bq = rand((D, D)), rand((1, D))
    wk, bk = rand((D, D)), rand((1, D))
    wv, bv = rand((D, D)), rand((1, D))

    # GRUCell weights, split per gate (r, z, n)
    wir, wiz, winn = rand((D, D)), rand((D, D)), rand((D, D))
    whr, whz, whn = rand((D, D)), rand((D, D)), rand((D, D))
    bir, biz, binn = rand((1, D)), rand((1, D)), rand((1, D))
    bhr, bhz, bhn = rand((1, D)), rand((1, D)), rand((1, D))

    # MLP
    w1, b1 = rand((D, HIDDEN)), rand((1, HIDDEN))
    w2, b2 = rand((HIDDEN, D)), rand((1, D))

    params = [gin, bin_, gsl, bsl, gff, bff,
              wq, bq, wk, bk, wv, bv,
              wir, wiz, winn, whr, whz, whn,
              bir, biz, binn, bhr, bhz, bhn,
              w1, b1, w2, b2]

    out = slot_attention_pallas(inputs, slots_init, params,
                                iters=ITERS, eps=EPS, scale=SCALE)
    out = jax.block_until_ready(out)

    ref = jax.block_until_ready(
        slot_attention_ref(inputs, slots_init, params,
                           iters=ITERS, eps=EPS, scale=SCALE))

    assert out.shape == (B, NUM_SLOTS, D)
    assert np.all(np.isfinite(np.asarray(out)))
    # Tolerance absorbs bf16 MXU operands + approximate EUP reciprocals in the kernel.
    np.testing.assert_allclose(np.asarray(out), np.asarray(ref),
                               rtol=2e-2, atol=2e-2)
    print("KERNEL_OK")
</pallas_src>

<mosaic_0001>
module attributes {stable_mosaic.version = 11 : i64} {
  func.func @kernel(%arg0: i32, %arg1: memref<32x32xf32, #tpu.memory_space<vmem>>, %arg2: memref<8x32xf32, #tpu.memory_space<vmem>>, %arg3: memref<11x128xf32, #tpu.memory_space<vmem>>, %arg4: memref<32x32xbf16, #tpu.memory_space<vmem>>, %arg5: memref<32x64xbf16, #tpu.memory_space<vmem>>, %arg6: memref<64x128xbf16, #tpu.memory_space<vmem>>, %arg7: memref<32x128xbf16, #tpu.memory_space<vmem>>, %arg8: memref<128x32xbf16, #tpu.memory_space<vmem>>, %arg9: memref<8x32xf32, #tpu.memory_space<vmem>>) attributes {dimension_semantics = [#tpu.dimension_semantics<parallel>], iteration_bounds = array<i64: 1>, scalar_prefetch = 0 : i64, scratch_operands = 0 : i64, tpu.core_type = #tpu.core_type<tc>, window_params = [{transform_indices = @transform_0, window_bounds = array<i64: 32, 32>}, {transform_indices = @transform_1, window_bounds = array<i64: 8, 32>}, {pipeline_mode = #tpu.pipeline_mode<synchronous>, transform_indices = @transform_2, window_bounds = array<i64: 11, 128>}, {pipeline_mode = #tpu.pipeline_mode<synchronous>, transform_indices = @transform_3, window_bounds = array<i64: 32, 32>}, {pipeline_mode = #tpu.pipeline_mode<synchronous>, transform_indices = @transform_4, window_bounds = array<i64: 32, 64>}, {pipeline_mode = #tpu.pipeline_mode<synchronous>, transform_indices = @transform_5, window_bounds = array<i64: 64, 128>}, {pipeline_mode = #tpu.pipeline_mode<synchronous>, transform_indices = @transform_6, window_bounds = array<i64: 32, 128>}, {pipeline_mode = #tpu.pipeline_mode<synchronous>, transform_indices = @transform_7, window_bounds = array<i64: 128, 32>}, {transform_indices = @transform_8, window_bounds = array<i64: 8, 32>}]} {
    %c0 = arith.constant 0 : index
    %c0_0 = arith.constant 0 : index
    %0 = vector.load %arg3[%c0, %c0_0] : memref<11x128xf32, #tpu.memory_space<vmem>>, vector<11x128xf32>
    %1 = vector.extract_strided_slice %0 {offsets = [0, 0], sizes = [1, 32], strides = [1, 1]} : vector<11x128xf32> to vector<1x32xf32>
    %2 = vector.extract_strided_slice %0 {offsets = [1, 0], sizes = [1, 32], strides = [1, 1]} : vector<11x128xf32> to vector<1x32xf32>
    %3 = vector.extract_strided_slice %0 {offsets = [2, 0], sizes = [1, 32], strides = [1, 1]} : vector<11x128xf32> to vector<1x32xf32>
    %4 = vector.extract_strided_slice %0 {offsets = [3, 0], sizes = [1, 32], strides = [1, 1]} : vector<11x128xf32> to vector<1x32xf32>
    %5 = vector.extract_strided_slice %0 {offsets = [4, 0], sizes = [1, 32], strides = [1, 1]} : vector<11x128xf32> to vector<1x32xf32>
    %6 = vector.extract_strided_slice %0 {offsets = [5, 0], sizes = [1, 32], strides = [1, 1]} : vector<11x128xf32> to vector<1x32xf32>
    %7 = vector.extract_strided_slice %0 {offsets = [6, 0], sizes = [1, 32], strides = [1, 1]} : vector<11x128xf32> to vector<1x32xf32>
    %8 = vector.extract_strided_slice %0 {offsets = [7, 0], sizes = [1, 64], strides = [1, 1]} : vector<11x128xf32> to vector<1x64xf32>
    %9 = vector.extract_strided_slice %0 {offsets = [8, 0], sizes = [1, 128], strides = [1, 1]} : vector<11x128xf32> to vector<1x128xf32>
    %10 = vector.extract_strided_slice %0 {offsets = [9, 0], sizes = [1, 128], strides = [1, 1]} : vector<11x128xf32> to vector<1x128xf32>
    %11 = vector.extract_strided_slice %0 {offsets = [10, 0], sizes = [1, 32], strides = [1, 1]} : vector<11x128xf32> to vector<1x32xf32>
    %c0_1 = arith.constant 0 : index
    %c0_2 = arith.constant 0 : index
    %12 = vector.load %arg4[%c0_1, %c0_2] : memref<32x32xbf16, #tpu.memory_space<vmem>>, vector<32x32xbf16>
    %c0_3 = arith.constant 0 : index
    %c0_4 = arith.constant 0 : index
    %13 = vector.load %arg5[%c0_3, %c0_4] : memref<32x64xbf16, #tpu.memory_space<vmem>>, vector<32x64xbf16>
    %c0_5 = arith.constant 0 : index
    %c0_6 = arith.constant 0 : index
    %14 = vector.load %arg6[%c0_5, %c0_6] : memref<64x128xbf16, #tpu.memory_space<vmem>>, vector<64x128xbf16>
    %c0_7 = arith.constant 0 : index
    %c0_8 = arith.constant 0 : index
    %15 = vector.load %arg7[%c0_7, %c0_8] : memref<32x128xbf16, #tpu.memory_space<vmem>>, vector<32x128xbf16>
    %c0_9 = arith.constant 0 : index
    %c0_10 = arith.constant 0 : index
    %16 = vector.load %arg8[%c0_9, %c0_10] : memref<128x32xbf16, #tpu.memory_space<vmem>>, vector<128x32xbf16>
    %c0_11 = arith.constant 0 : index
    %c0_12 = arith.constant 0 : index
    %17 = vector.load %arg1[%c0_11, %c0_12] : memref<32x32xf32, #tpu.memory_space<vmem>>, vector<32x32xf32>
    %cst = arith.constant dense<0.000000e+00> : vector<32xf32>
    %18 = vector.multi_reduction <add>, %17, %cst [1] : vector<32x32xf32> to vector<32xf32>
    %19 = vector.shape_cast %18 : vector<32xf32> to vector<32x1xf32>
    %cst_13 = arith.constant 3.200000e+01 : f32
    %20 = vector.broadcast %cst_13 : f32 to vector<32x1xf32>
    %21 = arith.divf %19, %20 : vector<32x1xf32>
    %22 = vector.broadcast %21 : vector<32x1xf32> to vector<32x32xf32>
    %23 = arith.subf %17, %22 : vector<32x32xf32>
    %24 = arith.mulf %23, %23 : vector<32x32xf32>
    %cst_14 = arith.constant dense<0.000000e+00> : vector<32xf32>
    %25 = vector.multi_reduction <add>, %24, %cst_14 [1] : vector<32x32xf32> to vector<32xf32>
    %26 = vector.shape_cast %25 : vector<32xf32> to vector<32x1xf32>
    %cst_15 = arith.constant 3.200000e+01 : f32
    %27 = vector.broadcast %cst_15 : f32 to vector<32x1xf32>
    %28 = arith.divf %26, %27 : vector<32x1xf32>
    %29 = vector.broadcast %21 : vector<32x1xf32> to vector<32x32xf32>
    %30 = arith.subf %17, %29 : vector<32x32xf32>
    %cst_16 = arith.constant 9.99999974E-6 : f32
    %31 = vector.broadcast %cst_16 : f32 to vector<32x1xf32>
    %32 = arith.addf %28, %31 : vector<32x1xf32>
    %33 = math.rsqrt %32 : vector<32x1xf32>
    %34 = vector.broadcast %33 : vector<32x1xf32> to vector<32x32xf32>
    %35 = arith.mulf %30, %34 : vector<32x32xf32>
    %36 = vector.broadcast %1 : vector<1x32xf32> to vector<32x32xf32>
    %37 = arith.mulf %35, %36 : vector<32x32xf32>
    %38 = vector.broadcast %2 : vector<1x32xf32> to vector<32x32xf32>
    %39 = arith.addf %37, %38 : vector<32x32xf32>
    %40 = arith.truncf %39 : vector<32x32xf32> to vector<32x32xbf16>
    %cst_17 = arith.constant dense<0.000000e+00> : vector<32x64xf32>
    %41 = tpu.matmul %40, %13, %cst_17 {dimension_numbers = #tpu.dot_dimension_numbers<[1], [0], [0], [1], [0, 0, 1, 1], [], []>} : vector<32x32xbf16>, vector<32x64xbf16>, vector<32x64xf32> -> vector<32x64xf32>
    %42 = vector.broadcast %8 : vector<1x64xf32> to vector<32x64xf32>
    %43 = arith.addf %41, %42 : vector<32x64xf32>
    %44 = vector.extract_strided_slice %43 {offsets = [0, 0], sizes = [32, 32], strides = [1, 1]} : vector<32x64xf32> to vector<32x32xf32>
    %45 = vector.extract_strided_slice %43 {offsets = [0, 32], sizes = [32, 32], strides = [1, 1]} : vector<32x64xf32> to vector<32x32xf32>
    %46 = vector.shape_cast %44 : vector<32x32xf32> to vector<2x16x32xf32>
    %47 = tpu.transpose %46, [0, 2, 1] : vector<2x16x32xf32> -> vector<2x32x16xf32>
    %48 = arith.truncf %47 : vector<2x32x16xf32> to vector<2x32x16xbf16>
    %49 = vector.shape_cast %45 : vector<32x32xf32> to vector<2x16x32xf32>
    %50 = arith.truncf %49 : vector<2x16x32xf32> to vector<2x16x32xbf16>
    %c0_18 = arith.constant 0 : index
    %c0_19 = arith.constant 0 : index
    %51 = vector.load %arg2[%c0_18, %c0_19] : memref<8x32xf32, #tpu.memory_space<vmem>>, vector<8x32xf32>
    %cst_20 = arith.constant dense<0.000000e+00> : vector<8xf32>
    %52 = vector.multi_reduction <add>, %51, %cst_20 [1] : vector<8x32xf32> to vector<8xf32>
    %53 = vector.shape_cast %52 : vector<8xf32> to vector<8x1xf32>
    %cst_21 = arith.constant 3.200000e+01 : f32
    %54 = vector.broadcast %cst_21 : f32 to vector<8x1xf32>
    %55 = arith.divf %53, %54 : vector<8x1xf32>
    %56 = vector.broadcast %55 : vector<8x1xf32> to vector<8x32xf32>
    %57 = arith.subf %51, %56 : vector<8x32xf32>
    %58 = arith.mulf %57, %57 : vector<8x32xf32>
    %cst_22 = arith.constant dense<0.000000e+00> : vector<8xf32>
    %59 = vector.multi_reduction <add>, %58, %cst_22 [1] : vector<8x32xf32> to vector<8xf32>
    %60 = vector.shape_cast %59 : vector<8xf32> to vector<8x1xf32>
    %cst_23 = arith.constant 3.200000e+01 : f32
    %61 = vector.broadcast %cst_23 : f32 to vector<8x1xf32>
    %62 = arith.divf %60, %61 : vector<8x1xf32>
    %63 = vector.broadcast %55 : vector<8x1xf32> to vector<8x32xf32>
    %64 = arith.subf %51, %63 : vector<8x32xf32>
    %cst_24 = arith.constant 9.99999974E-6 : f32
    %65 = vector.broadcast %cst_24 : f32 to vector<8x1xf32>
    %66 = arith.addf %62, %65 : vector<8x1xf32>
    %67 = math.rsqrt %66 : vector<8x1xf32>
    %68 = vector.broadcast %67 : vector<8x1xf32> to vector<8x32xf32>
    %69 = arith.mulf %64, %68 : vector<8x32xf32>
    %70 = vector.broadcast %3 : vector<1x32xf32> to vector<8x32xf32>
    %71 = arith.mulf %69, %70 : vector<8x32xf32>
    %72 = vector.broadcast %4 : vector<1x32xf32> to vector<8x32xf32>
    %73 = arith.addf %71, %72 : vector<8x32xf32>
    %74 = arith.truncf %73 : vector<8x32xf32> to vector<8x32xbf16>
    %cst_25 = arith.constant dense<0.000000e+00> : vector<8x32xf32>
    %75 = tpu.matmul %74, %12, %cst_25 {dimension_numbers = #tpu.dot_dimension_numbers<[1], [0], [0], [1], [0, 0, 1, 1], [], []>} : vector<8x32xbf16>, vector<32x32xbf16>, vector<8x32xf32> -> vector<8x32xf32>
    %76 = vector.broadcast %7 : vector<1x32xf32> to vector<8x32xf32>
    %77 = arith.addf %75, %76 : vector<8x32xf32>
    %78 = vector.shape_cast %77 : vector<8x32xf32> to vector<2x4x32xf32>
    %79 = arith.truncf %78 : vector<2x4x32xf32> to vector<2x4x32xbf16>
    "tpu.trace_start"() <{level = 10 : i32, message = "bid,bdj->bij"}> : () -> ()
    %cst_26 = arith.constant dense<0.000000e+00> : vector<2x4x16xf32>
    %80 = tpu.matmul %79, %48, %cst_26 {dimension_numbers = #tpu.dot_dimension_numbers<[2], [1], [1], [2], [0, 0, 0, 1, 1, 2], [0], [0]>} : vector<2x4x32xbf16>, vector<2x32x16xbf16>, vector<2x4x16xf32> -> vector<2x4x16xf32>
    "tpu.trace_stop"() : () -> ()
    %cst_27 = arith.constant dense<0xFF800000> : vector<2x16xf32>
    %81 = vector.multi_reduction <maximumf>, %80, %cst_27 [1] : vector<2x4x16xf32> to vector<2x16xf32>
    %82 = vector.shape_cast %81 : vector<2x16xf32> to vector<2x1x16xf32>
    %83 = vector.broadcast %82 : vector<2x1x16xf32> to vector<2x4x16xf32>
    %84 = arith.subf %80, %83 : vector<2x4x16xf32>
    %85 = math.exp %84 : vector<2x4x16xf32>
    %cst_28 = arith.constant dense<0.000000e+00> : vector<2x16xf32>
    %86 = vector.multi_reduction <add>, %85, %cst_28 [1] : vector<2x4x16xf32> to vector<2x16xf32>
    %87 = vector.shape_cast %86 : vector<2x16xf32> to vector<2x1x16xf32>
    %88 = tpu.reciprocal %87 {approx = true} : vector<2x1x16xf32> -> vector<2x1x16xf32>
    %89 = vector.broadcast %88 : vector<2x1x16xf32> to vector<2x4x16xf32>
    %90 = arith.mulf %85, %89 : vector<2x4x16xf32>
    %cst_29 = arith.constant 9.99999993E-9 : f32
    %91 = vector.broadcast %cst_29 : f32 to vector<2x4x16xf32>
    %92 = arith.addf %90, %91 : vector<2x4x16xf32>
    %cst_30 = arith.constant dense<0.000000e+00> : vector<2x4xf32>
    %93 = vector.multi_reduction <add>, %92, %cst_30 [2] : vector<2x4x16xf32> to vector<2x4xf32>
    %94 = vector.shape_cast %93 : vector<2x4xf32> to vector<2x4x1xf32>
    %95 = tpu.reciprocal %94 {approx = true} : vector<2x4x1xf32> -> vector<2x4x1xf32>
    %96 = vector.broadcast %95 : vector<2x4x1xf32> to vector<2x4x16xf32>
    %97 = arith.mulf %92, %96 : vector<2x4x16xf32>
    %98 = arith.truncf %97 : vector<2x4x16xf32> to vector<2x4x16xbf16>
    "tpu.trace_start"() <{level = 10 : i32, message = "bij,bjd->bid"}> : () -> ()
    %cst_31 = arith.constant dense<0.000000e+00> : vector<2x4x32xf32>
    %99 = tpu.matmul %98, %50, %cst_31 {dimension_numbers = #tpu.dot_dimension_numbers<[2], [1], [1], [2], [0, 0, 0, 1, 1, 2], [0], [0]>} : vector<2x4x16xbf16>, vector<2x16x32xbf16>, vector<2x4x32xf32> -> vector<2x4x32xf32>
    "tpu.trace_stop"() : () -> ()
    %100 = vector.shape_cast %99 : vector<2x4x32xf32> to vector<8x32xf32>
    %101 = tpu.concatenate %100, %51 in 1 : vector<8x32xf32>, vector<8x32xf32> -> vector<8x64xf32>
    %102 = arith.truncf %101 : vector<8x64xf32> to vector<8x64xbf16>
    %cst_32 = arith.constant dense<0.000000e+00> : vector<8x128xf32>
    %103 = tpu.matmul %102, %14, %cst_32 {dimension_numbers = #tpu.dot_dimension_numbers<[1], [0], [0], [1], [0, 0, 1, 1], [], []>} : vector<8x64xbf16>, vector<64x128xbf16>, vector<8x128xf32> -> vector<8x128xf32>
    %104 = vector.broadcast %9 : vector<1x128xf32> to vector<8x128xf32>
    %105 = arith.addf %103, %104 : vector<8x128xf32>
    %106 = vector.extract_strided_slice %105 {offsets = [0, 0], sizes = [8, 32], strides = [1, 1]} : vector<8x128xf32> to vector<8x32xf32>
    %107 = arith.negf %106 : vector<8x32xf32>
    %108 = math.exp %107 : vector<8x32xf32>
    %cst_33 = arith.constant 1.000000e+00 : f32
    %109 = vector.broadcast %cst_33 : f32 to vector<8x32xf32>
    %110 = arith.addf %109, %108 : vector<8x32xf32>
    %111 = arith.divf %109, %110 : vector<8x32xf32>
    %112 = vector.extract_strided_slice %105 {offsets = [0, 32], sizes = [8, 32], strides = [1, 1]} : vector<8x128xf32> to vector<8x32xf32>
    %113 = arith.negf %112 : vector<8x32xf32>
    %114 = math.exp %113 : vector<8x32xf32>
    %cst_34 = arith.constant 1.000000e+00 : f32
    %115 = vector.broadcast %cst_34 : f32 to vector<8x32xf32>
    %116 = arith.addf %115, %114 : vector<8x32xf32>
    %117 = arith.divf %115, %116 : vector<8x32xf32>
    %118 = vector.extract_strided_slice %105 {offsets = [0, 64], sizes = [8, 32], strides = [1, 1]} : vector<8x128xf32> to vector<8x32xf32>
    %119 = vector.extract_strided_slice %105 {offsets = [0, 96], sizes = [8, 32], strides = [1, 1]} : vector<8x128xf32> to vector<8x32xf32>
    %120 = arith.mulf %111, %119 : vector<8x32xf32>
    %121 = arith.addf %118, %120 : vector<8x32xf32>
    %122 = math.tanh %121 : vector<8x32xf32>
    %cst_35 = arith.constant 1.000000e+00 : f32
    %123 = vector.broadcast %cst_35 : f32 to vector<8x32xf32>
    %124 = arith.subf %123, %117 : vector<8x32xf32>
    %125 = arith.mulf %124, %122 : vector<8x32xf32>
    %126 = arith.mulf %117, %51 : vector<8x32xf32>
    %127 = arith.addf %125, %126 : vector<8x32xf32>
    %cst_36 = arith.constant dense<0.000000e+00> : vector<8xf32>
    %128 = vector.multi_reduction <add>, %127, %cst_36 [1] : vector<8x32xf32> to vector<8xf32>
    %129 = vector.shape_cast %128 : vector<8xf32> to vector<8x1xf32>
    %cst_37 = arith.constant 3.200000e+01 : f32
    %130 = vector.broadcast %cst_37 : f32 to vector<8x1xf32>
    %131 = arith.divf %129, %130 : vector<8x1xf32>
    %132 = vector.broadcast %131 : vector<8x1xf32> to vector<8x32xf32>
    %133 = arith.subf %127, %132 : vector<8x32xf32>
    %134 = arith.mulf %133, %133 : vector<8x32xf32>
    %cst_38 = arith.constant dense<0.000000e+00> : vector<8xf32>
    %135 = vector.multi_reduction <add>, %134, %cst_38 [1] : vector<8x32xf32> to vector<8xf32>
    %136 = vector.shape_cast %135 : vector<8xf32> to vector<8x1xf32>
    %cst_39 = arith.constant 3.200000e+01 : f32
    %137 = vector.broadcast %cst_39 : f32 to vector<8x1xf32>
    %138 = arith.divf %136, %137 : vector<8x1xf32>
    %139 = vector.broadcast %131 : vector<8x1xf32> to vector<8x32xf32>
    %140 = arith.subf %127, %139 : vector<8x32xf32>
    %cst_40 = arith.constant 9.99999974E-6 : f32
    %141 = vector.broadcast %cst_40 : f32 to vector<8x1xf32>
    %142 = arith.addf %138, %141 : vector<8x1xf32>
    %143 = math.rsqrt %142 : vector<8x1xf32>
    %144 = vector.broadcast %143 : vector<8x1xf32> to vector<8x32xf32>
    %145 = arith.mulf %140, %144 : vector<8x32xf32>
    %146 = vector.broadcast %5 : vector<1x32xf32> to vector<8x32xf32>
    %147 = arith.mulf %145, %146 : vector<8x32xf32>
    %148 = vector.broadcast %6 : vector<1x32xf32> to vector<8x32xf32>
    %149 = arith.addf %147, %148 : vector<8x32xf32>
    %150 = arith.truncf %149 : vector<8x32xf32> to vector<8x32xbf16>
    %cst_41 = arith.constant dense<0.000000e+00> : vector<8x128xf32>
    %151 = tpu.matmul %150, %15, %cst_41 {dimension_numbers = #tpu.dot_dimension_numbers<[1], [0], [0], [1], [0, 0, 1, 1], [], []>} : vector<8x32xbf16>, vector<32x128xbf16>, vector<8x128xf32> -> vector<8x128xf32>
    %152 = vector.broadcast %10 : vector<1x128xf32> to vector<8x128xf32>
    %153 = arith.addf %151, %152 : vector<8x128xf32>
    %cst_42 = arith.constant 0.000000e+00 : f32
    %154 = vector.broadcast %cst_42 : f32 to vector<8x128xf32>
    %155 = arith.maximumf %153, %154 : vector<8x128xf32>
    %156 = arith.truncf %155 : vector<8x128xf32> to vector<8x128xbf16>
    %cst_43 = arith.constant dense<0.000000e+00> : vector<8x32xf32>
    %157 = tpu.matmul %156, %16, %cst_43 {dimension_numbers = #tpu.dot_dimension_numbers<[1], [0], [0], [1], [0, 0, 1, 1], [], []>} : vector<8x128xbf16>, vector<128x32xbf16>, vector<8x32xf32> -> vector<8x32xf32>
    %158 = arith.addf %127, %157 : vector<8x32xf32>
    %159 = vector.broadcast %11 : vector<1x32xf32> to vector<8x32xf32>
    %160 = arith.addf %158, %159 : vector<8x32xf32>
    %cst_44 = arith.constant dense<0.000000e+00> : vector<8xf32>
    %161 = vector.multi_reduction <add>, %160, %cst_44 [1] : vector<8x32xf32> to vector<8xf32>
    %162 = vector.shape_cast %161 : vector<8xf32> to vector<8x1xf32>
    %cst_45 = arith.constant 3.200000e+01 : f32
    %163 = vector.broadcast %cst_45 : f32 to vector<8x1xf32>
    %164 = arith.divf %162, %163 : vector<8x1xf32>
    %165 = vector.broadcast %164 : vector<8x1xf32> to vector<8x32xf32>
    %166 = arith.subf %160, %165 : vector<8x32xf32>
    %167 = arith.mulf %166, %166 : vector<8x32xf32>
    %cst_46 = arith.constant dense<0.000000e+00> : vector<8xf32>
    %168 = vector.multi_reduction <add>, %167, %cst_46 [1] : vector<8x32xf32> to vector<8xf32>
    %169 = vector.shape_cast %168 : vector<8xf32> to vector<8x1xf32>
    %cst_47 = arith.constant 3.200000e+01 : f32
    %170 = vector.broadcast %cst_47 : f32 to vector<8x1xf32>
    %171 = arith.divf %169, %170 : vector<8x1xf32>
    %172 = vector.broadcast %164 : vector<8x1xf32> to vector<8x32xf32>
    %173 = arith.subf %160, %172 : vector<8x32xf32>
    %cst_48 = arith.constant 9.99999974E-6 : f32
    %174 = vector.broadcast %cst_48 : f32 to vector<8x1xf32>
    %175 = arith.addf %171, %174 : vector<8x1xf32>
    %176 = math.rsqrt %175 : vector<8x1xf32>
    %177 = vector.broadcast %176 : vector<8x1xf32> to vector<8x32xf32>
    %178 = arith.mulf %173, %177 : vector<8x32xf32>
    %179 = vector.broadcast %3 : vector<1x32xf32> to vector<8x32xf32>
    %180 = arith.mulf %178, %179 : vector<8x32xf32>
    %181 = vector.broadcast %4 : vector<1x32xf32> to vector<8x32xf32>
    %182 = arith.addf %180, %181 : vector<8x32xf32>
    %183 = arith.truncf %182 : vector<8x32xf32> to vector<8x32xbf16>
    %cst_49 = arith.constant dense<0.000000e+00> : vector<8x32xf32>
    %184 = tpu.matmul %183, %12, %cst_49 {dimension_numbers = #tpu.dot_dimension_numbers<[1], [0], [0], [1], [0, 0, 1, 1], [], []>} : vector<8x32xbf16>, vector<32x32xbf16>, vector<8x32xf32> -> vector<8x32xf32>
    %185 = vector.broadcast %7 : vector<1x32xf32> to vector<8x32xf32>
    %186 = arith.addf %184, %185 : vector<8x32xf32>
    %187 = vector.shape_cast %186 : vector<8x32xf32> to vector<2x4x32xf32>
    %188 = arith.truncf %187 : vector<2x4x32xf32> to vector<2x4x32xbf16>
    "tpu.trace_start"() <{level = 10 : i32, message = "bid,bdj->bij"}> : () -> ()
    %cst_50 = arith.constant dense<0.000000e+00> : vector<2x4x16xf32>
    %189 = tpu.matmul %188, %48, %cst_50 {dimension_numbers = #tpu.dot_dimension_numbers<[2], [1], [1], [2], [0, 0, 0, 1, 1, 2], [0], [0]>} : vector<2x4x32xbf16>, vector<2x32x16xbf16>, vector<2x4x16xf32> -> vector<2x4x16xf32>
    "tpu.trace_stop"() : () -> ()
    %cst_51 = arith.constant dense<0xFF800000> : vector<2x16xf32>
    %190 = vector.multi_reduction <maximumf>, %189, %cst_51 [1] : vector<2x4x16xf32> to vector<2x16xf32>
    %191 = vector.shape_cast %190 : vector<2x16xf32> to vector<2x1x16xf32>
    %192 = vector.broadcast %191 : vector<2x1x16xf32> to vector<2x4x16xf32>
    %193 = arith.subf %189, %192 : vector<2x4x16xf32>
    %194 = math.exp %193 : vector<2x4x16xf32>
    %cst_52 = arith.constant dense<0.000000e+00> : vector<2x16xf32>
    %195 = vector.multi_reduction <add>, %194, %cst_52 [1] : vector<2x4x16xf32> to vector<2x16xf32>
    %196 = vector.shape_cast %195 : vector<2x16xf32> to vector<2x1x16xf32>
    %197 = tpu.reciprocal %196 {approx = true} : vector<2x1x16xf32> -> vector<2x1x16xf32>
    %198 = vector.broadcast %197 : vector<2x1x16xf32> to vector<2x4x16xf32>
    %199 = arith.mulf %194, %198 : vector<2x4x16xf32>
    %cst_53 = arith.constant 9.99999993E-9 : f32
    %200 = vector.broadcast %cst_53 : f32 to vector<2x4x16xf32>
    %201 = arith.addf %199, %200 : vector<2x4x16xf32>
    %cst_54 = arith.constant dense<0.000000e+00> : vector<2x4xf32>
    %202 = vector.multi_reduction <add>, %201, %cst_54 [2] : vector<2x4x16xf32> to vector<2x4xf32>
    %203 = vector.shape_cast %202 : vector<2x4xf32> to vector<2x4x1xf32>
    %204 = tpu.reciprocal %203 {approx = true} : vector<2x4x1xf32> -> vector<2x4x1xf32>
    %205 = vector.broadcast %204 : vector<2x4x1xf32> to vector<2x4x16xf32>
    %206 = arith.mulf %201, %205 : vector<2x4x16xf32>
    %207 = arith.truncf %206 : vector<2x4x16xf32> to vector<2x4x16xbf16>
    "tpu.trace_start"() <{level = 10 : i32, message = "bij,bjd->bid"}> : () -> ()
    %cst_55 = arith.constant dense<0.000000e+00> : vector<2x4x32xf32>
    %208 = tpu.matmul %207, %50, %cst_55 {dimension_numbers = #tpu.dot_dimension_numbers<[2], [1], [1], [2], [0, 0, 0, 1, 1, 2], [0], [0]>} : vector<2x4x16xbf16>, vector<2x16x32xbf16>, vector<2x4x32xf32> -> vector<2x4x32xf32>
    "tpu.trace_stop"() : () -> ()
    %209 = vector.shape_cast %208 : vector<2x4x32xf32> to vector<8x32xf32>
    %210 = tpu.concatenate %209, %160 in 1 : vector<8x32xf32>, vector<8x32xf32> -> vector<8x64xf32>
    %211 = arith.truncf %210 : vector<8x64xf32> to vector<8x64xbf16>
    %cst_56 = arith.constant dense<0.000000e+00> : vector<8x128xf32>
    %212 = tpu.matmul %211, %14, %cst_56 {dimension_numbers = #tpu.dot_dimension_numbers<[1], [0], [0], [1], [0, 0, 1, 1], [], []>} : vector<8x64xbf16>, vector<64x128xbf16>, vector<8x128xf32> -> vector<8x128xf32>
    %213 = vector.broadcast %9 : vector<1x128xf32> to vector<8x128xf32>
    %214 = arith.addf %212, %213 : vector<8x128xf32>
    %215 = vector.extract_strided_slice %214 {offsets = [0, 0], sizes = [8, 32], strides = [1, 1]} : vector<8x128xf32> to vector<8x32xf32>
    %216 = arith.negf %215 : vector<8x32xf32>
    %217 = math.exp %216 : vector<8x32xf32>
    %cst_57 = arith.constant 1.000000e+00 : f32
    %218 = vector.broadcast %cst_57 : f32 to vector<8x32xf32>
    %219 = arith.addf %218, %217 : vector<8x32xf32>
    %220 = arith.divf %218, %219 : vector<8x32xf32>
    %221 = vector.extract_strided_slice %214 {offsets = [0, 32], sizes = [8, 32], strides = [1, 1]} : vector<8x128xf32> to vector<8x32xf32>
    %222 = arith.negf %221 : vector<8x32xf32>
    %223 = math.exp %222 : vector<8x32xf32>
    %cst_58 = arith.constant 1.000000e+00 : f32
    %224 = vector.broadcast %cst_58 : f32 to vector<8x32xf32>
    %225 = arith.addf %224, %223 : vector<8x32xf32>
    %226 = arith.divf %224, %225 : vector<8x32xf32>
    %227 = vector.extract_strided_slice %214 {offsets = [0, 64], sizes = [8, 32], strides = [1, 1]} : vector<8x128xf32> to vector<8x32xf32>
    %228 = vector.extract_strided_slice %214 {offsets = [0, 96], sizes = [8, 32], strides = [1, 1]} : vector<8x128xf32> to vector<8x32xf32>
    %229 = arith.mulf %220, %228 : vector<8x32xf32>
    %230 = arith.addf %227, %229 : vector<8x32xf32>
    %231 = math.tanh %230 : vector<8x32xf32>
    %cst_59 = arith.constant 1.000000e+00 : f32
    %232 = vector.broadcast %cst_59 : f32 to vector<8x32xf32>
    %233 = arith.subf %232, %226 : vector<8x32xf32>
    %234 = arith.mulf %233, %231 : vector<8x32xf32>
    %235 = arith.mulf %226, %160 : vector<8x32xf32>
    %236 = arith.addf %234, %235 : vector<8x32xf32>
    %cst_60 = arith.constant dense<0.000000e+00> : vector<8xf32>
    %237 = vector.multi_reduction <add>, %236, %cst_60 [1] : vector<8x32xf32> to vector<8xf32>
    %238 = vector.shape_cast %237 : vector<8xf32> to vector<8x1xf32>
    %cst_61 = arith.constant 3.200000e+01 : f32
    %239 = vector.broadcast %cst_61 : f32 to vector<8x1xf32>
    %240 = arith.divf %238, %239 : vector<8x1xf32>
    %241 = vector.broadcast %240 : vector<8x1xf32> to vector<8x32xf32>
    %242 = arith.subf %236, %241 : vector<8x32xf32>
    %243 = arith.mulf %242, %242 : vector<8x32xf32>
    %cst_62 = arith.constant dense<0.000000e+00> : vector<8xf32>
    %244 = vector.multi_reduction <add>, %243, %cst_62 [1] : vector<8x32xf32> to vector<8xf32>
    %245 = vector.shape_cast %244 : vector<8xf32> to vector<8x1xf32>
    %cst_63 = arith.constant 3.200000e+01 : f32
    %246 = vector.broadcast %cst_63 : f32 to vector<8x1xf32>
    %247 = arith.divf %245, %246 : vector<8x1xf32>
    %248 = vector.broadcast %240 : vector<8x1xf32> to vector<8x32xf32>
    %249 = arith.subf %236, %248 : vector<8x32xf32>
    %cst_64 = arith.constant 9.99999974E-6 : f32
    %250 = vector.broadcast %cst_64 : f32 to vector<8x1xf32>
    %251 = arith.addf %247, %250 : vector<8x1xf32>
    %252 = math.rsqrt %251 : vector<8x1xf32>
    %253 = vector.broadcast %252 : vector<8x1xf32> to vector<8x32xf32>
    %254 = arith.mulf %249, %253 : vector<8x32xf32>
    %255 = vector.broadcast %5 : vector<1x32xf32> to vector<8x32xf32>
    %256 = arith.mulf %254, %255 : vector<8x32xf32>
    %257 = vector.broadcast %6 : vector<1x32xf32> to vector<8x32xf32>
    %258 = arith.addf %256, %257 : vector<8x32xf32>
    %259 = arith.truncf %258 : vector<8x32xf32> to vector<8x32xbf16>
    %cst_65 = arith.constant dense<0.000000e+00> : vector<8x128xf32>
    %260 = tpu.matmul %259, %15, %cst_65 {dimension_numbers = #tpu.dot_dimension_numbers<[1], [0], [0], [1], [0, 0, 1, 1], [], []>} : vector<8x32xbf16>, vector<32x128xbf16>, vector<8x128xf32> -> vector<8x128xf32>
    %261 = vector.broadcast %10 : vector<1x128xf32> to vector<8x128xf32>
    %262 = arith.addf %260, %261 : vector<8x128xf32>
    %cst_66 = arith.constant 0.000000e+00 : f32
    %263 = vector.broadcast %cst_66 : f32 to vector<8x128xf32>
    %264 = arith.maximumf %262, %263 : vector<8x128xf32>
    %265 = arith.truncf %264 : vector<8x128xf32> to vector<8x128xbf16>
    %cst_67 = arith.constant dense<0.000000e+00> : vector<8x32xf32>
    %266 = tpu.matmul %265, %16, %cst_67 {dimension_numbers = #tpu.dot_dimension_numbers<[1], [0], [0], [1], [0, 0, 1, 1], [], []>} : vector<8x128xbf16>, vector<128x32xbf16>, vector<8x32xf32> -> vector<8x32xf32>
    %267 = arith.addf %236, %266 : vector<8x32xf32>
    %268 = vector.broadcast %11 : vector<1x32xf32> to vector<8x32xf32>
    %269 = arith.addf %267, %268 : vector<8x32xf32>
    %cst_68 = arith.constant dense<0.000000e+00> : vector<8xf32>
    %270 = vector.multi_reduction <add>, %269, %cst_68 [1] : vector<8x32xf32> to vector<8xf32>
    %271 = vector.shape_cast %270 : vector<8xf32> to vector<8x1xf32>
    %cst_69 = arith.constant 3.200000e+01 : f32
    %272 = vector.broadcast %cst_69 : f32 to vector<8x1xf32>
    %273 = arith.divf %271, %272 : vector<8x1xf32>
    %274 = vector.broadcast %273 : vector<8x1xf32> to vector<8x32xf32>
    %275 = arith.subf %269, %274 : vector<8x32xf32>
    %276 = arith.mulf %275, %275 : vector<8x32xf32>
    %cst_70 = arith.constant dense<0.000000e+00> : vector<8xf32>
    %277 = vector.multi_reduction <add>, %276, %cst_70 [1] : vector<8x32xf32> to vector<8xf32>
    %278 = vector.shape_cast %277 : vector<8xf32> to vector<8x1xf32>
    %cst_71 = arith.constant 3.200000e+01 : f32
    %279 = vector.broadcast %cst_71 : f32 to vector<8x1xf32>
    %280 = arith.divf %278, %279 : vector<8x1xf32>
    %281 = vector.broadcast %273 : vector<8x1xf32> to vector<8x32xf32>
    %282 = arith.subf %269, %281 : vector<8x32xf32>
    %cst_72 = arith.constant 9.99999974E-6 : f32
    %283 = vector.broadcast %cst_72 : f32 to vector<8x1xf32>
    %284 = arith.addf %280, %283 : vector<8x1xf32>
    %285 = math.rsqrt %284 : vector<8x1xf32>
    %286 = vector.broadcast %285 : vector<8x1xf32> to vector<8x32xf32>
    %287 = arith.mulf %282, %286 : vector<8x32xf32>
    %288 = vector.broadcast %3 : vector<1x32xf32> to vector<8x32xf32>
    %289 = arith.mulf %287, %288 : vector<8x32xf32>
    %290 = vector.broadcast %4 : vector<1x32xf32> to vector<8x32xf32>
    %291 = arith.addf %289, %290 : vector<8x32xf32>
    %292 = arith.truncf %291 : vector<8x32xf32> to vector<8x32xbf16>
    %cst_73 = arith.constant dense<0.000000e+00> : vector<8x32xf32>
    %293 = tpu.matmul %292, %12, %cst_73 {dimension_numbers = #tpu.dot_dimension_numbers<[1], [0], [0], [1], [0, 0, 1, 1], [], []>} : vector<8x32xbf16>, vector<32x32xbf16>, vector<8x32xf32> -> vector<8x32xf32>
    %294 = vector.broadcast %7 : vector<1x32xf32> to vector<8x32xf32>
    %295 = arith.addf %293, %294 : vector<8x32xf32>
    %296 = vector.shape_cast %295 : vector<8x32xf32> to vector<2x4x32xf32>
    %297 = arith.truncf %296 : vector<2x4x32xf32> to vector<2x4x32xbf16>
    "tpu.trace_start"() <{level = 10 : i32, message = "bid,bdj->bij"}> : () -> ()
    %cst_74 = arith.constant dense<0.000000e+00> : vector<2x4x16xf32>
    %298 = tpu.matmul %297, %48, %cst_74 {dimension_numbers = #tpu.dot_dimension_numbers<[2], [1], [1], [2], [0, 0, 0, 1, 1, 2], [0], [0]>} : vector<2x4x32xbf16>, vector<2x32x16xbf16>, vector<2x4x16xf32> -> vector<2x4x16xf32>
    "tpu.trace_stop"() : () -> ()
    %cst_75 = arith.constant dense<0xFF800000> : vector<2x16xf32>
    %299 = vector.multi_reduction <maximumf>, %298, %cst_75 [1] : vector<2x4x16xf32> to vector<2x16xf32>
    %300 = vector.shape_cast %299 : vector<2x16xf32> to vector<2x1x16xf32>
    %301 = vector.broadcast %300 : vector<2x1x16xf32> to vector<2x4x16xf32>
    %302 = arith.subf %298, %301 : vector<2x4x16xf32>
    %303 = math.exp %302 : vector<2x4x16xf32>
    %cst_76 = arith.constant dense<0.000000e+00> : vector<2x16xf32>
    %304 = vector.multi_reduction <add>, %303, %cst_76 [1] : vector<2x4x16xf32> to vector<2x16xf32>
    %305 = vector.shape_cast %304 : vector<2x16xf32> to vector<2x1x16xf32>
    %306 = tpu.reciprocal %305 {approx = true} : vector<2x1x16xf32> -> vector<2x1x16xf32>
    %307 = vector.broadcast %306 : vector<2x1x16xf32> to vector<2x4x16xf32>
    %308 = arith.mulf %303, %307 : vector<2x4x16xf32>
    %cst_77 = arith.constant 9.99999993E-9 : f32
    %309 = vector.broadcast %cst_77 : f32 to vector<2x4x16xf32>
    %310 = arith.addf %308, %309 : vector<2x4x16xf32>
    %cst_78 = arith.constant dense<0.000000e+00> : vector<2x4xf32>
    %311 = vector.multi_reduction <add>, %310, %cst_78 [2] : vector<2x4x16xf32> to vector<2x4xf32>
    %312 = vector.shape_cast %311 : vector<2x4xf32> to vector<2x4x1xf32>
    %313 = tpu.reciprocal %312 {approx = true} : vector<2x4x1xf32> -> vector<2x4x1xf32>
    %314 = vector.broadcast %313 : vector<2x4x1xf32> to vector<2x4x16xf32>
    %315 = arith.mulf %310, %314 : vector<2x4x16xf32>
    %316 = arith.truncf %315 : vector<2x4x16xf32> to vector<2x4x16xbf16>
    "tpu.trace_start"() <{level = 10 : i32, message = "bij,bjd->bid"}> : () -> ()
    %cst_79 = arith.constant dense<0.000000e+00> : vector<2x4x32xf32>
    %317 = tpu.matmul %316, %50, %cst_79 {dimension_numbers = #tpu.dot_dimension_numbers<[2], [1], [1], [2], [0, 0, 0, 1, 1, 2], [0], [0]>} : vector<2x4x16xbf16>, vector<2x16x32xbf16>, vector<2x4x32xf32> -> vector<2x4x32xf32>
    "tpu.trace_stop"() : () -> ()
    %318 = vector.shape_cast %317 : vector<2x4x32xf32> to vector<8x32xf32>
    %319 = tpu.concatenate %318, %269 in 1 : vector<8x32xf32>, vector<8x32xf32> -> vector<8x64xf32>
    %320 = arith.truncf %319 : vector<8x64xf32> to vector<8x64xbf16>
    %cst_80 = arith.constant dense<0.000000e+00> : vector<8x128xf32>
    %321 = tpu.matmul %320, %14, %cst_80 {dimension_numbers = #tpu.dot_dimension_numbers<[1], [0], [0], [1], [0, 0, 1, 1], [], []>} : vector<8x64xbf16>, vector<64x128xbf16>, vector<8x128xf32> -> vector<8x128xf32>
    %322 = vector.broadcast %9 : vector<1x128xf32> to vector<8x128xf32>
    %323 = arith.addf %321, %322 : vector<8x128xf32>
    %324 = vector.extract_strided_slice %323 {offsets = [0, 0], sizes = [8, 32], strides = [1, 1]} : vector<8x128xf32> to vector<8x32xf32>
    %325 = arith.negf %324 : vector<8x32xf32>
    %326 = math.exp %325 : vector<8x32xf32>
    %cst_81 = arith.constant 1.000000e+00 : f32
    %327 = vector.broadcast %cst_81 : f32 to vector<8x32xf32>
    %328 = arith.addf %327, %326 : vector<8x32xf32>
    %329 = arith.divf %327, %328 : vector<8x32xf32>
    %330 = vector.extract_strided_slice %323 {offsets = [0, 32], sizes = [8, 32], strides = [1, 1]} : vector<8x128xf32> to vector<8x32xf32>
    %331 = arith.negf %330 : vector<8x32xf32>
    %332 = math.exp %331 : vector<8x32xf32>
    %cst_82 = arith.constant 1.000000e+00 : f32
    %333 = vector.broadcast %cst_82 : f32 to vector<8x32xf32>
    %334 = arith.addf %333, %332 : vector<8x32xf32>
    %335 = arith.divf %333, %334 : vector<8x32xf32>
    %336 = vector.extract_strided_slice %323 {offsets = [0, 64], sizes = [8, 32], strides = [1, 1]} : vector<8x128xf32> to vector<8x32xf32>
    %337 = vector.extract_strided_slice %323 {offsets = [0, 96], sizes = [8, 32], strides = [1, 1]} : vector<8x128xf32> to vector<8x32xf32>
    %338 = arith.mulf %329, %337 : vector<8x32xf32>
    %339 = arith.addf %336, %338 : vector<8x32xf32>
    %340 = math.tanh %339 : vector<8x32xf32>
    %cst_83 = arith.constant 1.000000e+00 : f32
    %341 = vector.broadcast %cst_83 : f32 to vector<8x32xf32>
    %342 = arith.subf %341, %335 : vector<8x32xf32>
    %343 = arith.mulf %342, %340 : vector<8x32xf32>
    %344 = arith.mulf %335, %269 : vector<8x32xf32>
    %345 = arith.addf %343, %344 : vector<8x32xf32>
    %cst_84 = arith.constant dense<0.000000e+00> : vector<8xf32>
    %346 = vector.multi_reduction <add>, %345, %cst_84 [1] : vector<8x32xf32> to vector<8xf32>
    %347 = vector.shape_cast %346 : vector<8xf32> to vector<8x1xf32>
    %cst_85 = arith.constant 3.200000e+01 : f32
    %348 = vector.broadcast %cst_85 : f32 to vector<8x1xf32>
    %349 = arith.divf %347, %348 : vector<8x1xf32>
    %350 = vector.broadcast %349 : vector<8x1xf32> to vector<8x32xf32>
    %351 = arith.subf %345, %350 : vector<8x32xf32>
    %352 = arith.mulf %351, %351 : vector<8x32xf32>
    %cst_86 = arith.constant dense<0.000000e+00> : vector<8xf32>
    %353 = vector.multi_reduction <add>, %352, %cst_86 [1] : vector<8x32xf32> to vector<8xf32>
    %354 = vector.shape_cast %353 : vector<8xf32> to vector<8x1xf32>
    %cst_87 = arith.constant 3.200000e+01 : f32
    %355 = vector.broadcast %cst_87 : f32 to vector<8x1xf32>
    %356 = arith.divf %354, %355 : vector<8x1xf32>
    %357 = vector.broadcast %349 : vector<8x1xf32> to vector<8x32xf32>
    %358 = arith.subf %345, %357 : vector<8x32xf32>
    %cst_88 = arith.constant 9.99999974E-6 : f32
    %359 = vector.broadcast %cst_88 : f32 to vector<8x1xf32>
    %360 = arith.addf %356, %359 : vector<8x1xf32>
    %361 = math.rsqrt %360 : vector<8x1xf32>
    %362 = vector.broadcast %361 : vector<8x1xf32> to vector<8x32xf32>
    %363 = arith.mulf %358, %362 : vector<8x32xf32>
    %364 = vector.broadcast %5 : vector<1x32xf32> to vector<8x32xf32>
    %365 = arith.mulf %363, %364 : vector<8x32xf32>
    %366 = vector.broadcast %6 : vector<1x32xf32> to vector<8x32xf32>
    %367 = arith.addf %365, %366 : vector<8x32xf32>
    %368 = arith.truncf %367 : vector<8x32xf32> to vector<8x32xbf16>
    %cst_89 = arith.constant dense<0.000000e+00> : vector<8x128xf32>
    %369 = tpu.matmul %368, %15, %cst_89 {dimension_numbers = #tpu.dot_dimension_numbers<[1], [0], [0], [1], [0, 0, 1, 1], [], []>} : vector<8x32xbf16>, vector<32x128xbf16>, vector<8x128xf32> -> vector<8x128xf32>
    %370 = vector.broadcast %10 : vector<1x128xf32> to vector<8x128xf32>
    %371 = arith.addf %369, %370 : vector<8x128xf32>
    %cst_90 = arith.constant 0.000000e+00 : f32
    %372 = vector.broadcast %cst_90 : f32 to vector<8x128xf32>
    %373 = arith.maximumf %371, %372 : vector<8x128xf32>
    %374 = arith.truncf %373 : vector<8x128xf32> to vector<8x128xbf16>
    %cst_91 = arith.constant dense<0.000000e+00> : vector<8x32xf32>
    %375 = tpu.matmul %374, %16, %cst_91 {dimension_numbers = #tpu.dot_dimension_numbers<[1], [0], [0], [1], [0, 0, 1, 1], [], []>} : vector<8x128xbf16>, vector<128x32xbf16>, vector<8x32xf32> -> vector<8x32xf32>
    %376 = arith.addf %345, %375 : vector<8x32xf32>
    %377 = vector.broadcast %11 : vector<1x32xf32> to vector<8x32xf32>
    %378 = arith.addf %376, %377 : vector<8x32xf32>
    %c0_92 = arith.constant 0 : index
    %c0_93 = arith.constant 0 : index
    %379 = vector.load %arg9[%c0_92, %c0_93] : memref<8x32xf32, #tpu.memory_space<vmem>>, vector<8x32xf32>
    tpu.vector_store %arg9[%c0_92, %c0_93], %378 {strides = array<i32>} : memref<8x32xf32, #tpu.memory_space<vmem>>, vector<8x32xf32>,
    return
  }
  func.func @transform_0(%arg0: i32) -> (i32, i32) {
    %c0_i32 = arith.constant 0 : i32
    %c0_i32_0 = arith.constant 0 : i32
    return %arg0, %c0_i32 : i32, i32
  }
  func.func @transform_1(%arg0: i32) -> (i32, i32) {
    %c0_i32 = arith.constant 0 : i32
    %c0_i32_0 = arith.constant 0 : i32
    return %arg0, %c0_i32 : i32, i32
  }
  func.func @transform_2(%arg0: i32) -> (i32, i32) {
    %c0_i32 = arith.constant 0 : i32
    %c0_i32_0 = arith.constant 0 : i32
    %c0_i32_1 = arith.constant 0 : i32
    return %c0_i32, %c0_i32_0 : i32, i32
  }
  func.func @transform_3(%arg0: i32) -> (i32, i32) {
    %c0_i32 = arith.constant 0 : i32
    %c0_i32_0 = arith.constant 0 : i32
    %c0_i32_1 = arith.constant 0 : i32
    return %c0_i32, %c0_i32_0 : i32, i32
  }
  func.func @transform_4(%arg0: i32) -> (i32, i32) {
    %c0_i32 = arith.constant 0 : i32
    %c0_i32_0 = arith.constant 0 : i32
    %c0_i32_1 = arith.constant 0 : i32
    return %c0_i32, %c0_i32_0 : i32, i32
  }
  func.func @transform_5(%arg0: i32) -> (i32, i32) {
    %c0_i32 = arith.constant 0 : i32
    %c0_i32_0 = arith.constant 0 : i32
    %c0_i32_1 = arith.constant 0 : i32
    return %c0_i32, %c0_i32_0 : i32, i32
  }
  func.func @transform_6(%arg0: i32) -> (i32, i32) {
    %c0_i32 = arith.constant 0 : i32
    %c0_i32_0 = arith.constant 0 : i32
    %c0_i32_1 = arith.constant 0 : i32
    return %c0_i32, %c0_i32_0 : i32, i32
  }
  func.func @transform_7(%arg0: i32) -> (i32, i32) {
    %c0_i32 = arith.constant 0 : i32
    %c0_i32_0 = arith.constant 0 : i32
    %c0_i32_1 = arith.constant 0 : i32
    return %c0_i32, %c0_i32_0 : i32, i32
  }
  func.func @transform_8(%arg0: i32) -> (i32, i32) {
    %c0_i32 = arith.constant 0 : i32
    %c0_i32_0 = arith.constant 0 : i32
    return %arg0, %c0_i32 : i32, i32
  }
}

</mosaic_0001>

<llo_original>
// kernel: tpu_custom_call.1
$region0: #{tpu_custom_call.1}
  #allocation0 [shape = 'u32[]', space=smem, size = 0x4, offset = 0x4, fixed_abs, tag = 'smem constant byte address 0x4 - core index']
  #allocation1 [shape = 'u32[144,128]{1,0:T(1,128)}', space=vmem, size = 0x12000, scoped, tag = 'internal scratch']
  %s0 = inlined_call_operand.vmem [shape: f32[32,32], index: 0, kind: input, shape index: {}]
  %s1 = inlined_call_operand.hbm [shape: f32[8,32], index: 1, kind: input, shape index: {}]
  %s2 = inlined_call_operand.vmem [shape: f32[11,128], index: 2, kind: input, shape index: {}]
  %s3 = inlined_call_operand.hbm [shape: bf16[32,32], index: 3, kind: input, shape index: {}]
  %s4 = inlined_call_operand.hbm [shape: bf16[32,64], index: 4, kind: input, shape index: {}]
  %s5 = inlined_call_operand.vmem [shape: bf16[64,128], index: 5, kind: input, shape index: {}]
  %s6 = inlined_call_operand.hbm [shape: bf16[32,128], index: 6, kind: input, shape index: {}]
  %s7 = inlined_call_operand.vmem [shape: bf16[128,32], index: 7, kind: input, shape index: {}]
  %s8 = inlined_call_operand.hbm [shape: f32[8,32], index: 8, kind: output, shape index: {}]
  %s9 = sld [smem:[#allocation0]]
  $region58: #{tpu_custom_call.1} parent=0
    _
  %s11 = ssub.s32 1, %s9
  %s12 = scalar_select 0, %s11, %s9
  $region1: #{tpu_custom_call.1} parent=0
    #allocation2 [shape = 'u8[4096]{0}', space=vmem, size = 0x1000, scoped, tag = 'input window, operand 1, single buffered']
    #allocation3 [shape = 's32[1]{0}', space=sflag, size = 0x4, scoped, tag = 'scoped memory for tpu_custom_call.1']
    #allocation4 [shape = 's32[1]{0}', space=sflag, size = 0x4, scoped, tag = 'scoped memory for tpu_custom_call.1']
    #allocation5 [shape = 'u8[8192]{0}', space=vmem, size = 0x2000, scoped, tag = 'input window, operand 3, single buffered']
    #allocation6 [shape = 's32[1]{0}', space=sflag, size = 0x4, scoped, tag = 'scoped memory for tpu_custom_call.1']
    #allocation7 [shape = 'u8[8192]{0}', space=vmem, size = 0x2000, scoped, tag = 'input window, operand 4, single buffered']
    #allocation8 [shape = 'u8[8192]{0}', space=vmem, size = 0x2000, scoped, tag = 'input window, operand 6, single buffered']
    #allocation9 [shape = 's32[1]{0}', space=sflag, size = 0x4, scoped, tag = 'scoped memory for tpu_custom_call.1']
    #allocation10 [shape = 'u8[4096]{0}', space=vmem, size = 0x1000, scoped, tag = 'output window, operand 0, single buffered']
    %13 = vsyncpa [#allocation3], 0
    %14 = vsyncpa [#allocation6], 0
    %15 = vsyncpa [#allocation9], 0
    %16 = vsyncpa [#allocation4], 0
    // Predicated region
    $region2: #{tpu_custom_call.1} parent=1 // pred_check
      _
    $region3: #{tpu_custom_call.1} parent=1 // pred_check_branch
      %18 = sbr.rel (0) target = $region5
    $region4: #{tpu_custom_call.1} parent=1 // pred_region
      _
    $region5: #{tpu_custom_call.1} parent=1 // pred_fallthru
      _
    // Predicated region
    $region6: #{tpu_custom_call.1} parent=1 // pred_check
      _
    $region7: #{tpu_custom_call.1} parent=1 // pred_check_branch
      %20 = sbr.rel (0) target = $region9
    $region8: #{tpu_custom_call.1} parent=1 // pred_region
      %s22 = ssub.s32 128, 128
      %23 = vsyncadd [#allocation3], %s22
      %s25 = sshll.u32 [#allocation2], 4
      %s26 = int_to_ptr.vmem [resolvable:$true] %s25
      %28 = dma.hbm_to_vmem [thread:$0]  %s1, 128, %s26, [#allocation3]
    $region9: #{tpu_custom_call.1} parent=1 // pred_fallthru
      _
    // Predicated region
    $region10: #{tpu_custom_call.1} parent=1 // pred_check
      _
    $region11: #{tpu_custom_call.1} parent=1 // pred_check_branch
      %30 = sbr.rel (0) target = $region13
    $region12: #{tpu_custom_call.1} parent=1 // pred_region
      _
    $region13: #{tpu_custom_call.1} parent=1 // pred_fallthru
      _
    // Predicated region
    $region14: #{tpu_custom_call.1} parent=1 // pred_check
      _
    $region15: #{tpu_custom_call.1} parent=1 // pred_check_branch
      %32 = sbr.rel (0) target = $region17
    $region16: #{tpu_custom_call.1} parent=1 // pred_region
      %s34 = ssub.s32 256, 256
      %35 = vsyncadd [#allocation6], %s34
      %s36 = sshll.u32 [#allocation5], 4
      %s37 = int_to_ptr.vmem [resolvable:$true] %s36
      %42 = dma.hbm_to_vmem [thread:$0]  %s3, 256, %s37, [#allocation6], 64, 64, 4
    $region17: #{tpu_custom_call.1} parent=1 // pred_fallthru
      _
    // Predicated region
    $region18: #{tpu_custom_call.1} parent=1 // pred_check
      _
    $region19: #{tpu_custom_call.1} parent=1 // pred_check_branch
      %44 = sbr.rel (0) target = $region21
    $region20: #{tpu_custom_call.1} parent=1 // pred_region
      %s46 = ssub.s32 256, 256
      %47 = vsyncadd [#allocation6], %s46
      %s48 = sshll.u32 [#allocation7], 4
      %s49 = int_to_ptr.vmem [resolvable:$true] %s48
      %54 = dma.hbm_to_vmem [thread:$0]  %s4, 256, %s49, [#allocation6], 64, 64, 4
    $region21: #{tpu_custom_call.1} parent=1 // pred_fallthru
      _
    // Predicated region
    $region22: #{tpu_custom_call.1} parent=1 // pred_check
      _
    $region23: #{tpu_custom_call.1} parent=1 // pred_check_branch
      %56 = sbr.rel (0) target = $region25
    $region24: #{tpu_custom_call.1} parent=1 // pred_region
      _
    $region25: #{tpu_custom_call.1} parent=1 // pred_fallthru
      _
    // Predicated region
    $region26: #{tpu_custom_call.1} parent=1 // pred_check
      _
    $region27: #{tpu_custom_call.1} parent=1 // pred_check_branch
      %58 = sbr.rel (0) target = $region29
    $region28: #{tpu_custom_call.1} parent=1 // pred_region
      %s60 = ssub.s32 256, 256
      %61 = vsyncadd [#allocation9], %s60
      %s62 = sshll.u32 [#allocation8], 4
      %s63 = int_to_ptr.vmem [resolvable:$true] %s62
      %68 = dma.hbm_to_vmem [thread:$0]  %s6, 256, %s63, [#allocation9], 64, 64, 4
    $region29: #{tpu_custom_call.1} parent=1 // pred_fallthru
      _
    // Predicated region
    $region30: #{tpu_custom_call.1} parent=1 // pred_check
      _
    $region31: #{tpu_custom_call.1} parent=1 // pred_check_branch
      %70 = sbr.rel (0) target = $region33
    $region32: #{tpu_custom_call.1} parent=1 // pred_region
      _
    $region33: #{tpu_custom_call.1} parent=1 // pred_fallthru
      _
    // Predicated region
    $region34: #{tpu_custom_call.1} parent=1 // pred_check
      _
    $region35: #{tpu_custom_call.1} parent=1 // pred_check_branch
      %72 = sbr.rel (0) target = $region37
    $region36: #{tpu_custom_call.1} parent=1 // pred_region
      %73 = dma.done [#allocation3], 128
    $region37: #{tpu_custom_call.1} parent=1 // pred_fallthru
      _
    // Predicated region
    $region38: #{tpu_custom_call.1} parent=1 // pred_check
      _
    $region39: #{tpu_custom_call.1} parent=1 // pred_check_branch
      %75 = sbr.rel (0) target = $region41
    $region40: #{tpu_custom_call.1} parent=1 // pred_region
      %76 = dma.done [#allocation6], 256
    $region41: #{tpu_custom_call.1} parent=1 // pred_fallthru
      _
    // Predicated region
    $region42: #{tpu_custom_call.1} parent=1 // pred_check
      _
    $region43: #{tpu_custom_call.1} parent=1 // pred_check_branch
      %78 = sbr.rel (0) target = $region45
    $region44: #{tpu_custom_call.1} parent=1 // pred_region
      %79 = dma.done [#allocation6], 256
    $region45: #{tpu_custom_call.1} parent=1 // pred_fallthru
      _
    // Predicated region
    $region46: #{tpu_custom_call.1} parent=1 // pred_check
      _
    $region47: #{tpu_custom_call.1} parent=1 // pred_check_branch
      %81 = sbr.rel (0) target = $region49
    $region48: #{tpu_custom_call.1} parent=1 // pred_region
      %82 = dma.done [#allocation9], 256
    $region49: #{tpu_custom_call.1} parent=1 // pred_fallthru
      _
    %v84 = vld [vmem:[%s2] sm:$0xff]
    %v85 = vld [vmem:[%s2 + $0x8] sm:$0x7]
    %v86 = vld [vmem:[#allocation5] sm:$0xf]
    %v87 = vld [vmem:[#allocation5 + $0x4] sm:$0xf]
    %v88 = vld [vmem:[#allocation5 + $0x8] sm:$0xf]
    %v89 = vld [vmem:[#allocation5 + $0xc] sm:$0xf]
    %v90 = vld [vmem:[#allocation7] sm:$0xf]
    %v91 = vld [vmem:[#allocation7 + $0x4] sm:$0xf]
    %v92 = vld [vmem:[#allocation7 + $0x8] sm:$0xf]
    %v93 = vld [vmem:[#allocation7 + $0xc] sm:$0xf]
    %v94 = vld [vmem:[%s5] sm:$0xf]
    %v95 = vld [vmem:[%s5 + $0x4] sm:$0xf]
    %v96 = vld [vmem:[%s5 + $0x8] sm:$0xf]
    %v97 = vld [vmem:[%s5 + $0xc] sm:$0xf]
    %v98 = vld [vmem:[%s5 + $0x10] sm:$0xf]
    %v99 = vld [vmem:[%s5 + $0x14] sm:$0xf]
    %v100 = vld [vmem:[%s5 + $0x18] sm:$0xf]
    %v101 = vld [vmem:[%s5 + $0x1c] sm:$0xf]
    %v102 = vld [vmem:[#allocation8] sm:$0xf]
    %v103 = vld [vmem:[#allocation8 + $0x4] sm:$0xf]
    %v104 = vld [vmem:[#allocation8 + $0x8] sm:$0xf]
    %v105 = vld [vmem:[#allocation8 + $0xc] sm:$0xf]
    %v106 = vld [vmem:[%s7] sm:$0xf]
    %v107 = vld [vmem:[%s7 + $0x4] sm:$0xf]
    %v108 = vld [vmem:[%s7 + $0x8] sm:$0xf]
    %v109 = vld [vmem:[%s7 + $0xc] sm:$0xf]
    %v110 = vld [vmem:[%s7 + $0x10] sm:$0xf]
    %v111 = vld [vmem:[%s7 + $0x14] sm:$0xf]
    %v112 = vld [vmem:[%s7 + $0x18] sm:$0xf]
    %v113 = vld [vmem:[%s7 + $0x1c] sm:$0xf]
    %v114 = vld [vmem:[%s7 + $0x20] sm:$0xf]
    %v115 = vld [vmem:[%s7 + $0x24] sm:$0xf]
    %v116 = vld [vmem:[%s7 + $0x28] sm:$0xf]
    %v117 = vld [vmem:[%s7 + $0x2c] sm:$0xf]
    %v118 = vld [vmem:[%s7 + $0x30] sm:$0xf]
    %v119 = vld [vmem:[%s7 + $0x34] sm:$0xf]
    %v120 = vld [vmem:[%s7 + $0x38] sm:$0xf]
    %v121 = vld [vmem:[%s7 + $0x3c] sm:$0xf]
    %v122 = vld [vmem:[%s0] sm:$0xff]
    %v123 = vld [vmem:[%s0 + $0x8] sm:$0xff]
    %v124 = vld [vmem:[%s0 + $0x10] sm:$0xff]
    %v125 = vld [vmem:[%s0 + $0x18] sm:$0xff]
    %vm126 = vcmask 261120
    %v127 = vsel %vm126, %v122, 0.0
    %128 = vadd.xlane.f32.xlu0 %v127
    %v129 = vpop.xlane.xlu0 %128
    %v130 = vsel %vm126, %v123, 0.0
    %131 = vadd.xlane.f32.xlu0 %v130
    %v132 = vpop.xlane.xlu0 %131
    %v133 = vsel %vm126, %v124, 0.0
    %134 = vadd.xlane.f32.xlu0 %v133
    %v135 = vpop.xlane.xlu0 %134
    %v136 = vsel %vm126, %v125, 0.0
    %137 = vadd.xlane.f32.xlu0 %v136
    %v138 = vpop.xlane.xlu0 %137
    %v139 = vrcp.pop 32.0
    %v140 = vmul.f32 %v129, %v139
    %v141 = vmul.f32 %v132, %v139
    %v142 = vmul.f32 %v135, %v139
    %v143 = vmul.f32 %v138, %v139
    %v144 = vsub.f32 %v122, %v140
    %v145 = vsub.f32 %v123, %v141
    %v146 = vsub.f32 %v124, %v142
    %v147 = vsub.f32 %v125, %v143
    %v148 = vmul.f32 %v144, %v144
    %v149 = vmul.f32 %v145, %v145
    %v150 = vmul.f32 %v146, %v146
    %v151 = vmul.f32 %v147, %v147
    %v152 = vsel %vm126, %v148, 0.0
    %153 = vadd.xlane.f32.xlu0 %v152
    %v154 = vpop.xlane.xlu0 %153
    %v155 = vsel %vm126, %v149, 0.0
    %156 = vadd.xlane.f32.xlu0 %v155
    %v157 = vpop.xlane.xlu0 %156
    %v158 = vsel %vm126, %v150, 0.0
    %159 = vadd.xlane.f32.xlu0 %v158
    %v160 = vpop.xlane.xlu0 %159
    %v161 = vsel %vm126, %v151, 0.0
    %162 = vadd.xlane.f32.xlu0 %v161
    %v163 = vpop.xlane.xlu0 %162
    %v164 = vmul.f32 %v154, %v139
    %v165 = vmul.f32 %v157, %v139
    %v166 = vmul.f32 %v160, %v139
    %v167 = vmul.f32 %v163, %v139
    %v168 = vadd.f32 %v164, 1e-05
    %v169 = vadd.f32 %v165, 1e-05
    %v170 = vadd.f32 %v166, 1e-05
    %v171 = vadd.f32 %v167, 1e-05
    %v172 = vrsqrt.pop %v168
    %v173 = vrsqrt.pop %v169
    %v174 = vrsqrt.pop %v170
    %v175 = vrsqrt.pop %v171
    %v176 = vmul.f32 %v144, %v172
    %v177 = vmul.f32 %v145, %v173
    %v178 = vmul.f32 %v146, %v174
    %v179 = vmul.f32 %v147, %v175
    %v180 = vlaneseq
    %v181 = vshrl.u32 %v180, 7
    %v182 = vsub.s32 0, %v181
    %v183 = vrot.slane %v84, %v182
    %v184 = vmul.f32 %v176, %v183
    %v185 = vmul.f32 %v177, %v183
    %v186 = vmul.f32 %v178, %v183
    %v187 = vmul.f32 %v179, %v183
    %v188 = vlaneseq
    %v189 = vshrl.u32 %v188, 7
    %v190 = vsub.s32 1, %v189
    %v191 = vrot.slane %v84, %v190
    %v192 = vadd.f32 %v184, %v191
    %v193 = vadd.f32 %v185, %v191
    %v194 = vadd.f32 %v186, %v191
    %v195 = vadd.f32 %v187, %v191
    %v196 = vpack.c.bf16 %v193, %v192
    %v197 = vpack.c.bf16 %v195, %v194
    %v198 = vlaneseq
    %v199 = vshrl.u32 %v198, 7
    %v200 = vsub.s32 7, %v199
    %v201 = vrot.slane %v84, %v200
    %v206 = vunpack.c.l.b16 %v90
    %v207 = vunpack.c.l.b16 %v91
    %v208 = vunpack.c.l.b16 %v92
    %v209 = vunpack.c.l.b16 %v93
    %v210 = vpack.c.b16 %v207, %v206
    %v211 = vpack.c.b16 %v209, %v208
    %v215 = vsel %vm126, %v196, 0
    %v218 = vsel %vm126, %v197, 0
    %220 = vmatprep.subr.bf16.mxu0 0
    %221 = vmatpush1.bf16.msra.mxu0 %v210
    %222 = vmatprep.subr.bf16.mxu0 0
    %223 = vmatpush1.bf16.msra.mxu0 %v211
    %224 = vmatprep.subr.bf16.mxu0 0
    %225 = vmatpush1.bf16.msra.mxu0 0
    %226 = vmatprep.subr.bf16.mxu0 0
    %227 = vmatpush1.bf16.msra.mxu0 0
    %228 = vmatprep.subr.bf16.mxu0 0
    %229 = vmatpush1.bf16.msra.mxu0 0
    %230 = vmatprep.subr.bf16.mxu0 0
    %231 = vmatpush1.bf16.msra.mxu0 0
    %232 = vmatprep.subr.bf16.mxu0 0
    %233 = vmatpush1.bf16.msra.mxu0 0
    %234 = vmatprep.subr.bf16.mxu0 0
    %235 = vmatpush1.bf16.msra.mxu0 0
    %236 = vmatprep.subr.bf16.mxu0 0
    %237 = vmatpush1.bf16.msra.mxu0 0
    %238 = vmatprep.subr.bf16.mxu0 0
    %239 = vmatpush1.bf16.msra.mxu0 0
    %240 = vmatprep.subr.bf16.mxu0 0
    %241 = vmatpush1.bf16.msra.mxu0 0
    %242 = vmatprep.subr.bf16.mxu0 0
    %243 = vmatpush1.bf16.msra.mxu0 0
    %244 = vmatprep.subr.bf16.mxu0 0
    %245 = vmatpush1.bf16.msra.mxu0 0
    %246 = vmatprep.subr.bf16.mxu0 0
    %247 = vmatpush1.bf16.msra.mxu0 0
    %248 = vmatprep.subr.bf16.mxu0 0
    %249 = vmatpush1.bf16.msra.mxu0 0
    %250 = vmatprep.subr.bf16.mxu0 0
    %251 = vmatpush1.bf16.msra.mxu0 0
    %252 = vmatprep.mubr.bf16.mxu0 0
    %253 = vmatmul.mubr.bf16.gmra.mrb[0].mxu0 %v215
    %v254 = vpop.f32.mrb[0].mxu0
    %v255 = vadd.f32 %v201, %v254
    %v256 = vpop.f32.mrb[0].mxu0
    %v257 = vpop.f32.mrb[0].mxu0
    %v258 = vadd.f32 %v201, %v257
    %v259 = vpop.f32.mrb[0].mxu0
    %260 = vmatprep.mubr.bf16.mxu0 0
    %261 = vmatmul.mubr.bf16.gmra.mrb[0].mxu0 %v218
    %v262 = vpop.f32.mrb[0].mxu0
    %v263 = vadd.f32 %v201, %v262
    %v264 = vpop.f32.mrb[0].mxu0
    %v265 = vpop.f32.mrb[0].mxu0
    %v266 = vadd.f32 %v201, %v265
    %v267 = vpop.f32.mrb[0].mxu0
    %268 = vdwg.mxu0
    %269 = vxpose.xlu0.b32.start [1/16] %v255, 128
    %270 = vxpose.xlu0.b32.cont [2/16] %v258, 128
    %271 = vxpose.xlu0.b32.cont [3/16] 0.0, 128
    %272 = vxpose.xlu0.b32.cont [4/16] 0.0, 128
    %273 = vxpose.xlu0.b32.cont [5/16] 0.0, 128
    %274 = vxpose.xlu0.b32.cont [6/16] 0.0, 128
    %275 = vxpose.xlu0.b32.cont [7/16] 0.0, 128
    %276 = vxpose.xlu0.b32.cont [8/16] 0.0, 128
    %277 = vxpose.xlu0.b32.cont [9/16] 0.0, 128
    %278 = vxpose.xlu0.b32.cont [10/16] 0.0, 128
    %279 = vxpose.xlu0.b32.cont [11/16] 0.0, 128
    %280 = vxpose.xlu0.b32.cont [12/16] 0.0, 128
    %281 = vxpose.xlu0.b32.cont [13/16] 0.0, 128
    %282 = vxpose.xlu0.b32.cont [14/16] 0.0, 128
    %283 = vxpose.xlu0.b32.cont [15/16] 0.0, 128
    %284 = vxpose.xlu0.b32.end [16/16] 0.0, 128
    %v285 = vpop.trf.xlu0
    %v286 = vpop.trf.xlu0
    %v287 = vpop.trf.xlu0
    %v288 = vpop.trf.xlu0
    %v289 = vpop.trf.xlu0
    %v290 = vpop.trf.xlu0
    %v291 = vpop.trf.xlu0
    %v292 = vpop.trf.xlu0
    %v293 = vpop.trf.xlu0
    %v294 = vpop.trf.xlu0
    %v295 = vpop.trf.xlu0
    %v296 = vpop.trf.xlu0
    %v297 = vpop.trf.xlu0
    %v298 = vpop.trf.xlu0
    %v299 = vpop.trf.xlu0
    %v300 = vpop.trf.xlu0
    %301 = vxpose.xlu0.b32.start [1/16] %v263, 128
    %302 = vxpose.xlu0.b32.cont [2/16] %v266, 128
    %303 = vxpose.xlu0.b32.cont [3/16] 0.0, 128
    %304 = vxpose.xlu0.b32.cont [4/16] 0.0, 128
    %305 = vxpose.xlu0.b32.cont [5/16] 0.0, 128
    %306 = vxpose.xlu0.b32.cont [6/16] 0.0, 128
    %307 = vxpose.xlu0.b32.cont [7/16] 0.0, 128
    %308 = vxpose.xlu0.b32.cont [8/16] 0.0, 128
    %309 = vxpose.xlu0.b32.cont [9/16] 0.0, 128
    %310 = vxpose.xlu0.b32.cont [10/16] 0.0, 128
    %311 = vxpose.xlu0.b32.cont [11/16] 0.0, 128
    %312 = vxpose.xlu0.b32.cont [12/16] 0.0, 128
    %313 = vxpose.xlu0.b32.cont [13/16] 0.0, 128
    %314 = vxpose.xlu0.b32.cont [14/16] 0.0, 128
    %315 = vxpose.xlu0.b32.cont [15/16] 0.0, 128
    %316 = vxpose.xlu0.b32.end [16/16] 0.0, 128
    %v317 = vpop.trf.xlu0
    %v318 = vpop.trf.xlu0
    %v319 = vpop.trf.xlu0
    %v320 = vpop.trf.xlu0
    %v321 = vpop.trf.xlu0
    %v322 = vpop.trf.xlu0
    %v323 = vpop.trf.xlu0
    %v324 = vpop.trf.xlu0
    %v325 = vpop.trf.xlu0
    %v326 = vpop.trf.xlu0
    %v327 = vpop.trf.xlu0
    %v328 = vpop.trf.xlu0
    %v329 = vpop.trf.xlu0
    %v330 = vpop.trf.xlu0
    %v331 = vpop.trf.xlu0
    %v332 = vpop.trf.xlu0
    %v333 = vpack.c.bf16 %v286, %v285
    %v334 = vpack.c.bf16 %v288, %v287
    %v335 = vpack.c.bf16 %v318, %v317
    %v336 = vpack.c.bf16 %v320, %v319
    %v337 = vpack.c.bf16 %v258, %v255
    %v338 = vpack.c.bf16 %v266, %v263
    %v339 = vld [vmem:[#allocation2] sm:$0xff]
    %v340 = vsel %vm126, %v339, 0.0
    %341 = vadd.xlane.f32.xlu0 %v340
    %v342 = vpop.xlane.xlu0 %341
    %v343 = vmul.f32 %v342, %v139
    %v344 = vsub.f32 %v339, %v343
    %v345 = vmul.f32 %v344, %v344
    %v346 = vsel %vm126, %v345, 0.0
    %347 = vadd.xlane.f32.xlu0 %v346
    %v348 = vpop.xlane.xlu0 %347
    %v349 = vmul.f32 %v348, %v139
    %v350 = vadd.f32 %v349, 1e-05
    %v351 = vrsqrt.pop %v350
    %v352 = vmul.f32 %v344, %v351
    %v353 = vlaneseq
    %v354 = vshrl.u32 %v353, 7
    %v355 = vsub.s32 2, %v354
    %v356 = vrot.slane %v84, %v355
    %v357 = vmul.f32 %v352, %v356
    %v358 = vlaneseq
    %v359 = vshrl.u32 %v358, 7
    %v360 = vsub.s32 3, %v359
    %v361 = vrot.slane %v84, %v360
    %v362 = vadd.f32 %v357, %v361
    %v363 = vpack.c.bf16 %v362, %v362
    %v364 = vlaneseq
    %v365 = vshrl.u32 %v364, 7
    %v366 = vsub.s32 6, %v365
    %v367 = vrot.slane %v84, %v366
    %v372 = vunpack.c.l.b16 %v86
    %v373 = vunpack.c.l.b16 %v87
    %v374 = vunpack.c.l.b16 %v88
    %v375 = vunpack.c.l.b16 %v89
    %v376 = vpack.c.b16 %v373, %v372
    %v377 = vpack.c.b16 %v375, %v374
    %v381 = vsel %vm126, %v363, 0
    %383 = vmatprep.subr.bf16.mxu0 0
    %384 = vmatpush1.bf16.msra.mxu0 %v376
    %385 = vmatprep.subr.bf16.mxu0 0
    %386 = vmatpush1.bf16.msra.mxu0 %v377
    %387 = vmatprep.subr.bf16.mxu0 0
    %388 = vmatpush1.bf16.msra.mxu0 0
    %389 = vmatprep.subr.bf16.mxu0 0
    %390 = vmatpush1.bf16.msra.mxu0 0
    %391 = vmatprep.subr.bf16.mxu0 0
    %392 = vmatpush1.bf16.msra.mxu0 0
    %393 = vmatprep.subr.bf16.mxu0 0
    %394 = vmatpush1.bf16.msra.mxu0 0
    %395 = vmatprep.subr.bf16.mxu0 0
    %396 = vmatpush1.bf16.msra.mxu0 0
    %397 = vmatprep.subr.bf16.mxu0 0
    %398 = vmatpush1.bf16.msra.mxu0 0
    %399 = vmatprep.subr.bf16.mxu0 0
    %400 = vmatpush1.bf16.msra.mxu0 0
    %401 = vmatprep.subr.bf16.mxu0 0
    %402 = vmatpush1.bf16.msra.mxu0 0
    %403 = vmatprep.subr.bf16.mxu0 0
    %404 = vmatpush1.bf16.msra.mxu0 0
    %405 = vmatprep.subr.bf16.mxu0 0
    %406 = vmatpush1.bf16.msra.mxu0 0
    %407 = vmatprep.subr.bf16.mxu0 0
    %408 = vmatpush1.bf16.msra.mxu0 0
    %409 = vmatprep.subr.bf16.mxu0 0
    %410 = vmatpush1.bf16.msra.mxu0 0
    %411 = vmatprep.subr.bf16.mxu0 0
    %412 = vmatpush1.bf16.msra.mxu0 0
    %413 = vmatprep.subr.bf16.mxu0 0
    %414 = vmatpush1.bf16.msra.mxu0 0
    %415 = vmatprep.mubr.bf16.mxu0 0
    %416 = vmatmul.mubr.bf16.gmra.mrb[0].mxu0 %v381
    %v417 = vpop.f32.mrb[0].mxu0
    %v418 = vadd.f32 %v367, %v417
    %v419 = vpop.f32.mrb[0].mxu0
    %v420 = vpop.f32.mrb[0].mxu0
    %v421 = vpop.f32.mrb[0].mxu0
    %422 = vdwg.mxu0
    %v424 = vcombine.high %v418, %v418
    %v426 = vpack.c.bf16 %v418, %v418
    %v427 = vpack.c.bf16 %v424, %v424
    %v429 = vsel %vm126, %v426, 0
    %431 = vmatprep.subr.bf16.mxu0 0
    %432 = vmatpush1.bf16.msra.mxu0 %v333
    %433 = vmatprep.subr.bf16.mxu0 0
    %434 = vmatpush1.bf16.msra.mxu0 %v334
    %435 = vmatprep.subr.bf16.mxu0 0
    %436 = vmatpush1.bf16.msra.mxu0 0
    %437 = vmatprep.subr.bf16.mxu0 0
    %438 = vmatpush1.bf16.msra.mxu0 0
    %439 = vmatprep.subr.bf16.mxu0 0
    %440 = vmatpush1.bf16.msra.mxu0 0
    %441 = vmatprep.subr.bf16.mxu0 0
    %442 = vmatpush1.bf16.msra.mxu0 0
    %443 = vmatprep.subr.bf16.mxu0 0
    %444 = vmatpush1.bf16.msra.mxu0 0
    %445 = vmatprep.subr.bf16.mxu0 0
    %446 = vmatpush1.bf16.msra.mxu0 0
    %447 = vmatprep.subr.bf16.mxu0 0
    %448 = vmatpush1.bf16.msra.mxu0 0
    %449 = vmatprep.subr.bf16.mxu0 0
    %450 = vmatpush1.bf16.msra.mxu0 0
    %451 = vmatprep.subr.bf16.mxu0 0
    %452 = vmatpush1.bf16.msra.mxu0 0
    %453 = vmatprep.subr.bf16.mxu0 0
    %454 = vmatpush1.bf16.msra.mxu0 0
    %455 = vmatprep.subr.bf16.mxu0 0
    %456 = vmatpush1.bf16.msra.mxu0 0
    %457 = vmatprep.subr.bf16.mxu0 0
    %458 = vmatpush1.bf16.msra.mxu0 0
    %459 = vmatprep.subr.bf16.mxu0 0
    %460 = vmatpush1.bf16.msra.mxu0 0
    %461 = vmatprep.subr.bf16.mxu0 0
    %462 = vmatpush1.bf16.msra.mxu0 0
    %463 = vmatprep.mubr.bf16.mxu0 0
    %464 = vmatmul.mubr.bf16.gmra.mrb[0].mxu0 %v429
    %v465 = vpop.f32.mrb[0].mxu0
    %v466 = vadd.f32 0.0, %v465
    %v467 = vpop.f32.mrb[0].mxu0
    %v468 = vpop.f32.mrb[0].mxu0
    %v469 = vpop.f32.mrb[0].mxu0
    %470 = vdwg.mxu0
    %v472 = vsel %vm126, %v427, 0
    %474 = vmatprep.subr.bf16.mxu0 0
    %475 = vmatpush1.bf16.msra.mxu0 %v335
    %476 = vmatprep.subr.bf16.mxu0 0
    %477 = vmatpush1.bf16.msra.mxu0 %v336
    %478 = vmatprep.subr.bf16.mxu0 0
    %479 = vmatpush1.bf16.msra.mxu0 0
    %480 = vmatprep.subr.bf16.mxu0 0
    %481 = vmatpush1.bf16.msra.mxu0 0
    %482 = vmatprep.subr.bf16.mxu0 0
    %483 = vmatpush1.bf16.msra.mxu0 0
    %484 = vmatprep.subr.bf16.mxu0 0
    %485 = vmatpush1.bf16.msra.mxu0 0
    %486 = vmatprep.subr.bf16.mxu0 0
    %487 = vmatpush1.bf16.msra.mxu0 0
    %488 = vmatprep.subr.bf16.mxu0 0
    %489 = vmatpush1.bf16.msra.mxu0 0
    %490 = vmatprep.subr.bf16.mxu0 0
    %491 = vmatpush1.bf16.msra.mxu0 0
    %492 = vmatprep.subr.bf16.mxu0 0
    %493 = vmatpush1.bf16.msra.mxu0 0
    %494 = vmatprep.subr.bf16.mxu0 0
    %495 = vmatpush1.bf16.msra.mxu0 0
    %496 = vmatprep.subr.bf16.mxu0 0
    %497 = vmatpush1.bf16.msra.mxu0 0
    %498 = vmatprep.subr.bf16.mxu0 0
    %499 = vmatpush1.bf16.msra.mxu0 0
    %500 = vmatprep.subr.bf16.mxu0 0
    %501 = vmatpush1.bf16.msra.mxu0 0
    %502 = vmatprep.subr.bf16.mxu0 0
    %503 = vmatpush1.bf16.msra.mxu0 0
    %504 = vmatprep.subr.bf16.mxu0 0
    %505 = vmatpush1.bf16.msra.mxu0 0
    %506 = vmatprep.mubr.bf16.mxu0 0
    %507 = vmatmul.mubr.bf16.gmra.mrb[0].mxu0 %v472
    %v508 = vpop.f32.mrb[0].mxu0
    %v509 = vadd.f32 0.0, %v508
    %v510 = vpop.f32.mrb[0].mxu0
    %v511 = vpop.f32.mrb[0].mxu0
    %v512 = vpop.f32.mrb[0].mxu0
    %513 = vdwg.mxu0
    %vm514 = vcmask 125952
    %v515 = vsel %vm514, %v466, -inf
    %v516 = vrot.slane %v515, 4
    %v517 = vmax.f32 %v515, %v516
    %v518 = vrot.slane %v517, 2
    %v519 = vmax.f32 %v517, %v518
    %v520 = vrot.slane %v519, 1
    %v521 = vmax.f32 %v519, %v520
    %v522 = vsel %vm514, %v509, -inf
    %v523 = vrot.slane %v522, 4
    %v524 = vmax.f32 %v522, %v523
    %v525 = vrot.slane %v524, 2
    %v526 = vmax.f32 %v524, %v525
    %v527 = vrot.slane %v526, 1
    %v528 = vmax.f32 %v526, %v527
    %v529 = vsub.f32 %v466, %v521
    %v530 = vsub.f32 %v509, %v528
    %v531 = vmul.f32 %v529, 1.442695
    %v532 = vpow.pop %v531
    %v533 = vmul.f32 %v530, 1.442695
    %v534 = vpow.pop %v533
    %v535 = vsel %vm514, %v532, 0.0
    %v536 = vrot.slane %v535, 4
    %v537 = vadd.f32 %v535, %v536
    %v538 = vrot.slane %v537, 2
    %v539 = vadd.f32 %v537, %v538
    %v540 = vrot.slane %v539, 1
    %v541 = vadd.f32 %v539, %v540
    %v542 = vsel %vm514, %v534, 0.0
    %v543 = vrot.slane %v542, 4
    %v544 = vadd.f32 %v542, %v543
    %v545 = vrot.slane %v544, 2
    %v546 = vadd.f32 %v544, %v545
    %v547 = vrot.slane %v546, 1
    %v548 = vadd.f32 %v546, %v547
    %v549 = vrcp.pop %v541
    %v550 = vrcp.pop %v548
    %v551 = vmul.f32 %v532, %v549
    %v552 = vmul.f32 %v534, %v550
    %v553 = vadd.f32 %v551, 1e-08
    %v554 = vadd.f32 %v552, 1e-08
    %v555 = vsel %vm514, %v553, 0.0
    %556 = vadd.xlane.f32.xlu0 %v555
    %v557 = vpop.xlane.xlu0 %556
    %v558 = vsel %vm514, %v554, 0.0
    %559 = vadd.xlane.f32.xlu0 %v558
    %v560 = vpop.xlane.xlu0 %559
    %v561 = vrcp.pop %v557
    %v562 = vrcp.pop %v560
    %v563 = vmul.f32 %v553, %v561
    %v564 = vmul.f32 %v554, %v562
    %v565 = vpack.c.bf16 %v563, %v563
    %v566 = vpack.c.bf16 %v564, %v564
    %568 = vrot.lane.b32.xlu0 %v337, 96
    %v569 = vpop.permute.xlu0 %568
    %vm571 = vcmask 130048
    %v573 = vsel %vm571, %v565, 0
    %575 = vmatprep.subr.bf16.mxu0 0
    %576 = vmatpush1.bf16.msra.mxu0 %v569
    %577 = vmatprep.subr.bf16.mxu0 0
    %578 = vmatpush1.bf16.msra.mxu0 0
    %579 = vmatprep.subr.bf16.mxu0 0
    %580 = vmatpush1.bf16.msra.mxu0 0
    %581 = vmatprep.subr.bf16.mxu0 0
    %582 = vmatpush1.bf16.msra.mxu0 0
    %583 = vmatprep.subr.bf16.mxu0 0
    %584 = vmatpush1.bf16.msra.mxu0 0
    %585 = vmatprep.subr.bf16.mxu0 0
    %586 = vmatpush1.bf16.msra.mxu0 0
    %587 = vmatprep.subr.bf16.mxu0 0
    %588 = vmatpush1.bf16.msra.mxu0 0
    %589 = vmatprep.subr.bf16.mxu0 0
    %590 = vmatpush1.bf16.msra.mxu0 0
    %591 = vmatprep.subr.bf16.mxu0 0
    %592 = vmatpush1.bf16.msra.mxu0 0
    %593 = vmatprep.subr.bf16.mxu0 0
    %594 = vmatpush1.bf16.msra.mxu0 0
    %595 = vmatprep.subr.bf16.mxu0 0
    %596 = vmatpush1.bf16.msra.mxu0 0
    %597 = vmatprep.subr.bf16.mxu0 0
    %598 = vmatpush1.bf16.msra.mxu0 0
    %599 = vmatprep.subr.bf16.mxu0 0
    %600 = vmatpush1.bf16.msra.mxu0 0
    %601 = vmatprep.subr.bf16.mxu0 0
    %602 = vmatpush1.bf16.msra.mxu0 0
    %603 = vmatprep.subr.bf16.mxu0 0
    %604 = vmatpush1.bf16.msra.mxu0 0
    %605 = vmatprep.subr.bf16.mxu0 0
    %606 = vmatpush1.bf16.msra.mxu0 0
    %607 = vmatprep.mubr.bf16.mxu0 0
    %608 = vmatmul.mubr.bf16.gmra.mrb[0].mxu0 %v573
    %v609 = vpop.f32.mrb[0].mxu0
    %v610 = vadd.f32 0.0, %v609
    %v611 = vpop.f32.mrb[0].mxu0
    %v612 = vpop.f32.mrb[0].mxu0
    %v613 = vpop.f32.mrb[0].mxu0
    %614 = vdwg.mxu0
    %616 = vrot.lane.b32.xlu0 %v338, 96
    %v617 = vpop.permute.xlu0 %616
    %v620 = vsel %vm571, %v566, 0
    %622 = vmatprep.subr.bf16.mxu0 0
    %623 = vmatpush1.bf16.msra.mxu0 %v617
    %624 = vmatprep.subr.bf16.mxu0 0
    %625 = vmatpush1.bf16.msra.mxu0 0
    %626 = vmatprep.subr.bf16.mxu0 0
    %627 = vmatpush1.bf16.msra.mxu0 0
    %628 = vmatprep.subr.bf16.mxu0 0
    %629 = vmatpush1.bf16.msra.mxu0 0
    %630 = vmatprep.subr.bf16.mxu0 0
    %631 = vmatpush1.bf16.msra.mxu0 0
    %632 = vmatprep.subr.bf16.mxu0 0
    %633 = vmatpush1.bf16.msra.mxu0 0
    %634 = vmatprep.subr.bf16.mxu0 0
    %635 = vmatpush1.bf16.msra.mxu0 0
    %636 = vmatprep.subr.bf16.mxu0 0
    %637 = vmatpush1.bf16.msra.mxu0 0
    %638 = vmatprep.subr.bf16.mxu0 0
    %639 = vmatpush1.bf16.msra.mxu0 0
    %640 = vmatprep.subr.bf16.mxu0 0
    %641 = vmatpush1.bf16.msra.mxu0 0
    %642 = vmatprep.subr.bf16.mxu0 0
    %643 = vmatpush1.bf16.msra.mxu0 0
    %644 = vmatprep.subr.bf16.mxu0 0
    %645 = vmatpush1.bf16.msra.mxu0 0
    %646 = vmatprep.subr.bf16.mxu0 0
    %647 = vmatpush1.bf16.msra.mxu0 0
    %648 = vmatprep.subr.bf16.mxu0 0
    %649 = vmatpush1.bf16.msra.mxu0 0
    %650 = vmatprep.subr.bf16.mxu0 0
    %651 = vmatpush1.bf16.msra.mxu0 0
    %652 = vmatprep.subr.bf16.mxu0 0
    %653 = vmatpush1.bf16.msra.mxu0 0
    %654 = vmatprep.mubr.bf16.mxu0 0
    %655 = vmatmul.mubr.bf16.gmra.mrb[0].mxu0 %v620
    %v656 = vpop.f32.mrb[0].mxu0
    %v657 = vadd.f32 0.0, %v656
    %v658 = vpop.f32.mrb[0].mxu0
    %v659 = vpop.f32.mrb[0].mxu0
    %v660 = vpop.f32.mrb[0].mxu0
    %661 = vdwg.mxu0
    %v664 = vcombine.low %v610, %v657
    %667 = vrot.lane.b32.xlu0 %v339, 32
    %v668 = vpop.permute.xlu0 %667
    %v670 = vsel %vm126, %v664, %v668
    %v671 = vpack.c.bf16 %v670, %v670
    %v672 = vlaneseq
    %v673 = vshrl.u32 %v672, 7
    %v674 = vsub.s32 0, %v673
    %v675 = vrot.slane %v85, %v674
    %v684 = vunpack.c.l.b16 %v94
    %v685 = vunpack.c.l.b16 %v95
    %v686 = vunpack.c.l.b16 %v96
    %v687 = vunpack.c.l.b16 %v97
    %v688 = vunpack.c.l.b16 %v98
    %v689 = vunpack.c.l.b16 %v99
    %v690 = vunpack.c.l.b16 %v100
    %v691 = vunpack.c.l.b16 %v101
    %v692 = vpack.c.b16 %v685, %v684
    %v693 = vpack.c.b16 %v687, %v686
    %v694 = vpack.c.b16 %v689, %v688
    %v695 = vpack.c.b16 %v691, %v690
    %vm700 = vcmask 523264
    %v702 = vsel %vm700, %v671, 0
    %704 = vmatprep.subr.bf16.mxu0 0
    %705 = vmatpush1.bf16.msra.mxu0 %v692
    %706 = vmatprep.subr.bf16.mxu0 0
    %707 = vmatpush1.bf16.msra.mxu0 %v693
    %708 = vmatprep.subr.bf16.mxu0 0
    %709 = vmatpush1.bf16.msra.mxu0 %v694
    %710 = vmatprep.subr.bf16.mxu0 0
    %711 = vmatpush1.bf16.msra.mxu0 %v695
    %712 = vmatprep.subr.bf16.mxu0 0
    %713 = vmatpush1.bf16.msra.mxu0 0
    %714 = vmatprep.subr.bf16.mxu0 0
    %715 = vmatpush1.bf16.msra.mxu0 0
    %716 = vmatprep.subr.bf16.mxu0 0
    %717 = vmatpush1.bf16.msra.mxu0 0
    %718 = vmatprep.subr.bf16.mxu0 0
    %719 = vmatpush1.bf16.msra.mxu0 0
    %720 = vmatprep.subr.bf16.mxu0 0
    %721 = vmatpush1.bf16.msra.mxu0 0
    %722 = vmatprep.subr.bf16.mxu0 0
    %723 = vmatpush1.bf16.msra.mxu0 0
    %724 = vmatprep.subr.bf16.mxu0 0
    %725 = vmatpush1.bf16.msra.mxu0 0
    %726 = vmatprep.subr.bf16.mxu0 0
    %727 = vmatpush1.bf16.msra.mxu0 0
    %728 = vmatprep.subr.bf16.mxu0 0
    %729 = vmatpush1.bf16.msra.mxu0 0
    %730 = vmatprep.subr.bf16.mxu0 0
    %731 = vmatpush1.bf16.msra.mxu0 0
    %732 = vmatprep.subr.bf16.mxu0 0
    %733 = vmatpush1.bf16.msra.mxu0 0
    %734 = vmatprep.subr.bf16.mxu0 0
    %735 = vmatpush1.bf16.msra.mxu0 0
    %736 = vmatprep.mubr.bf16.mxu0 0
    %737 = vmatmul.mubr.bf16.gmra.mrb[0].mxu0 %v702
    %v738 = vpop.f32.mrb[0].mxu0
    %v739 = vadd.f32 %v675, %v738
    %v740 = vpop.f32.mrb[0].mxu0
    %v741 = vpop.f32.mrb[0].mxu0
    %v742 = vpop.f32.mrb[0].mxu0
    %743 = vdwg.mxu0
    %v744 = vxor.u32 %v739, 2147483648
    %v745 = vmul.f32 %v744, 1.442695
    %v746 = vpow.pop %v745
    %v747 = vadd.f32 %v746, 1.0
    %v748 = vrcp.pop %v747
    %v749 = vmul.f32 1.0, %v748
    %751 = vrot.lane.b32.xlu0 %v739, 32
    %v752 = vpop.permute.xlu0 %751
    %v754 = vmul.f32 %v749, %v752
    %756 = vrot.lane.b32.xlu0 %v754, 64
    %v757 = vpop.permute.xlu0 %756
    %v759 = vadd.f32 %v739, %v757
    %v760 = vtanh.pop %v759
    %v761 = vsub.f32 1.0, %v749
    %763 = vrot.lane.b32.xlu0 %v760, 96
    %v764 = vpop.permute.xlu0 %763
    %v766 = vmul.f32 %v761, %v764
    %v767 = vmul.f32 %v749, %v668
    %v768 = vadd.f32 %v766, %v767
    %770 = vrot.lane.b32.xlu0 %v768, 96
    %v771 = vpop.permute.xlu0 %770
    %v773 = vsel %vm126, %v771, 0.0
    %774 = vadd.xlane.f32.xlu0 %v773
    %v775 = vpop.xlane.xlu0 %774
    %v776 = vmul.f32 %v775, %v139
    %v777 = vsub.f32 %v768, %v776
    %v778 = vmul.f32 %v777, %v777
    %780 = vrot.lane.b32.xlu0 %v778, 96
    %v781 = vpop.permute.xlu0 %780
    %v783 = vsel %vm126, %v781, 0.0
    %784 = vadd.xlane.f32.xlu0 %v783
    %v785 = vpop.xlane.xlu0 %784
    %v786 = vmul.f32 %v785, %v139
    %v787 = vadd.f32 %v786, 1e-05
    %v788 = vrsqrt.pop %v787
    %v789 = vmul.f32 %v777, %v788
    %v790 = vlaneseq
    %v791 = vshrl.u32 %v790, 7
    %v792 = vsub.s32 4, %v791
    %v793 = vrot.slane %v84, %v792
    %795 = vrot.lane.b32.xlu0 %v793, 32
    %v796 = vpop.permute.xlu0 %795
    %v798 = vmul.f32 %v789, %v796
    %v799 = vlaneseq
    %v800 = vshrl.u32 %v799, 7
    %v801 = vsub.s32 5, %v800
    %v802 = vrot.slane %v84, %v801
    %804 = vrot.lane.b32.xlu0 %v802, 32
    %v805 = vpop.permute.xlu0 %804
    %v807 = vadd.f32 %v798, %v805
    %v808 = vpack.c.bf16 %v807, %v807
    %v809 = vlaneseq
    %v810 = vshrl.u32 %v809, 7
    %v811 = vsub.s32 1, %v810
    %v812 = vrot.slane %v85, %v811
    %814 = vrot.lane.b32.xlu0 %v808, 96
    %v815 = vpop.permute.xlu0 %814
    %v820 = vunpack.c.l.b16 %v102
    %v821 = vunpack.c.l.b16 %v103
    %v822 = vunpack.c.l.b16 %v104
    %v823 = vunpack.c.l.b16 %v105
    %v824 = vpack.c.b16 %v821, %v820
    %v825 = vpack.c.b16 %v823, %v822
    %v829 = vsel %vm126, %v815, 0
    %831 = vmatprep.subr.bf16.mxu0 0
    %832 = vmatpush1.bf16.msra.mxu0 %v824
    %833 = vmatprep.subr.bf16.mxu0 0
    %834 = vmatpush1.bf16.msra.mxu0 %v825
    %835 = vmatprep.subr.bf16.mxu0 0
    %836 = vmatpush1.bf16.msra.mxu0 0
    %837 = vmatprep.subr.bf16.mxu0 0
    %838 = vmatpush1.bf16.msra.mxu0 0
    %839 = vmatprep.subr.bf16.mxu0 0
    %840 = vmatpush1.bf16.msra.mxu0 0
    %841 = vmatprep.subr.bf16.mxu0 0
    %842 = vmatpush1.bf16.msra.mxu0 0
    %843 = vmatprep.subr.bf16.mxu0 0
    %844 = vmatpush1.bf16.msra.mxu0 0
    %845 = vmatprep.subr.bf16.mxu0 0
    %846 = vmatpush1.bf16.msra.mxu0 0
    %847 = vmatprep.subr.bf16.mxu0 0
    %848 = vmatpush1.bf16.msra.mxu0 0
    %849 = vmatprep.subr.bf16.mxu0 0
    %850 = vmatpush1.bf16.msra.mxu0 0
    %851 = vmatprep.subr.bf16.mxu0 0
    %852 = vmatpush1.bf16.msra.mxu0 0
    %853 = vmatprep.subr.bf16.mxu0 0
    %854 = vmatpush1.bf16.msra.mxu0 0
    %855 = vmatprep.subr.bf16.mxu0 0
    %856 = vmatpush1.bf16.msra.mxu0 0
    %857 = vmatprep.subr.bf16.mxu0 0
    %858 = vmatpush1.bf16.msra.mxu0 0
    %859 = vmatprep.subr.bf16.mxu0 0
    %860 = vmatpush1.bf16.msra.mxu0 0
    %861 = vmatprep.subr.bf16.mxu0 0
    %862 = vmatpush1.bf16.msra.mxu0 0
    %863 = vmatprep.mubr.bf16.mxu0 0
    %864 = vmatmul.mubr.bf16.gmra.mrb[0].mxu0 %v829
    %v865 = vpop.f32.mrb[0].mxu0
    %v866 = vadd.f32 %v812, %v865
    %v867 = vpop.f32.mrb[0].mxu0
    %v868 = vpop.f32.mrb[0].mxu0
    %v869 = vpop.f32.mrb[0].mxu0
    %870 = vdwg.mxu0
    %v871 = vmax.f32 %v866, 0.0
    %v872 = vpack.c.bf16 %v871, %v871
    %v889 = vunpack.c.l.b16 %v106
    %v890 = vunpack.c.l.b16 %v107
    %v891 = vunpack.c.l.b16 %v108
    %v892 = vunpack.c.l.b16 %v109
    %v893 = vunpack.c.l.b16 %v110
    %v894 = vunpack.c.l.b16 %v111
    %v895 = vunpack.c.l.b16 %v112
    %v896 = vunpack.c.l.b16 %v113
    %v897 = vunpack.c.l.b16 %v114
    %v898 = vunpack.c.l.b16 %v115
    %v899 = vunpack.c.l.b16 %v116
    %v900 = vunpack.c.l.b16 %v117
    %v901 = vunpack.c.l.b16 %v118
    %v902 = vunpack.c.l.b16 %v119
    %v903 = vunpack.c.l.b16 %v120
    %v904 = vunpack.c.l.b16 %v121
    %v905 = vpack.c.b16 %v890, %v889
    %v906 = vpack.c.b16 %v892, %v891
    %v907 = vpack.c.b16 %v894, %v893
    %v908 = vpack.c.b16 %v896, %v895
    %v909 = vpack.c.b16 %v898, %v897
    %v910 = vpack.c.b16 %v900, %v899
    %v911 = vpack.c.b16 %v902, %v901
    %v912 = vpack.c.b16 %v904, %v903
    %921 = vmatprep.subr.bf16.mxu0 0
    %922 = vmatpush1.bf16.msra.mxu0 %v905
    %923 = vmatprep.subr.bf16.mxu0 0
    %924 = vmatpush1.bf16.msra.mxu0 %v906
    %925 = vmatprep.subr.bf16.mxu0 0
    %926 = vmatpush1.bf16.msra.mxu0 %v907
    %927 = vmatprep.subr.bf16.mxu0 0
    %928 = vmatpush1.bf16.msra.mxu0 %v908
    %929 = vmatprep.subr.bf16.mxu0 0
    %930 = vmatpush1.bf16.msra.mxu0 %v909
    %931 = vmatprep.subr.bf16.mxu0 0
    %932 = vmatpush1.bf16.msra.mxu0 %v910
    %933 = vmatprep.subr.bf16.mxu0 0
    %934 = vmatpush1.bf16.msra.mxu0 %v911
    %935 = vmatprep.subr.bf16.mxu0 0
    %936 = vmatpush1.bf16.msra.mxu0 %v912
    %937 = vmatprep.subr.bf16.mxu0 0
    %938 = vmatpush1.bf16.msra.mxu0 0
    %939 = vmatprep.subr.bf16.mxu0 0
    %940 = vmatpush1.bf16.msra.mxu0 0
    %941 = vmatprep.subr.bf16.mxu0 0
    %942 = vmatpush1.bf16.msra.mxu0 0
    %943 = vmatprep.subr.bf16.mxu0 0
    %944 = vmatpush1.bf16.msra.mxu0 0
    %945 = vmatprep.subr.bf16.mxu0 0
    %946 = vmatpush1.bf16.msra.mxu0 0
    %947 = vmatprep.subr.bf16.mxu0 0
    %948 = vmatpush1.bf16.msra.mxu0 0
    %949 = vmatprep.subr.bf16.mxu0 0
    %950 = vmatpush1.bf16.msra.mxu0 0
    %951 = vmatprep.subr.bf16.mxu0 0
    %952 = vmatpush1.bf16.msra.mxu0 0
    %953 = vmatprep.mubr.bf16.mxu0 0
    %954 = vmatmul.mubr.bf16.gmra.mrb[0].mxu0 %v872
    %v955 = vpop.f32.mrb[0].mxu0
    %v956 = vadd.f32 0.0, %v955
    %v957 = vpop.f32.mrb[0].mxu0
    %v958 = vpop.f32.mrb[0].mxu0
    %v959 = vpop.f32.mrb[0].mxu0
    %960 = vdwg.mxu0
    %962 = vrot.lane.b32.xlu0 %v956, 32
    %v963 = vpop.permute.xlu0 %962
    %v965 = vadd.f32 %v768, %v963
    %v966 = vlaneseq
    %v967 = vshrl.u32 %v966, 7
    %v968 = vsub.s32 2, %v967
    %v969 = vrot.slane %v85, %v968
    %971 = vrot.lane.b32.xlu0 %v969, 32
    %v972 = vpop.permute.xlu0 %971
    %v974 = vadd.f32 %v965, %v972
    %976 = vrot.lane.b32.xlu0 %v974, 96
    %v977 = vpop.permute.xlu0 %976
    %v979 = vsel %vm126, %v977, 0.0
    %980 = vadd.xlane.f32.xlu0 %v979
    %v981 = vpop.xlane.xlu0 %980
    %v982 = vmul.f32 %v981, %v139
    %v983 = vsub.f32 %v974, %v982
    %v984 = vmul.f32 %v983, %v983
    %986 = vrot.lane.b32.xlu0 %v984, 96
    %v987 = vpop.permute.xlu0 %986
    %v989 = vsel %vm126, %v987, 0.0
    %990 = vadd.xlane.f32.xlu0 %v989
    %v991 = vpop.xlane.xlu0 %990
    %v992 = vmul.f32 %v991, %v139
    %v993 = vadd.f32 %v992, 1e-05
    %v994 = vrsqrt.pop %v993
    %v995 = vmul.f32 %v983, %v994
    %997 = vrot.lane.b32.xlu0 %v356, 32
    %v998 = vpop.permute.xlu0 %997
    %v1000 = vmul.f32 %v995, %v998
    %1002 = vrot.lane.b32.xlu0 %v361, 32
    %v1003 = vpop.permute.xlu0 %1002
    %v1005 = vadd.f32 %v1000, %v1003
    %v1006 = vpack.c.bf16 %v1005, %v1005
    %1008 = vrot.lane.b32.xlu0 %v1006, 96
    %v1009 = vpop.permute.xlu0 %1008
    %v1011 = vsel %vm126, %v1009, 0
    %1013 = vmatprep.subr.bf16.mxu0 0
    %1014 = vmatpush1.bf16.msra.mxu0 %v376
    %1015 = vmatprep.subr.bf16.mxu0 0
    %1016 = vmatpush1.bf16.msra.mxu0 %v377
    %1017 = vmatprep.subr.bf16.mxu0 0
    %1018 = vmatpush1.bf16.msra.mxu0 0
    %1019 = vmatprep.subr.bf16.mxu0 0
    %1020 = vmatpush1.bf16.msra.mxu0 0
    %1021 = vmatprep.subr.bf16.mxu0 0
    %1022 = vmatpush1.bf16.msra.mxu0 0
    %1023 = vmatprep.subr.bf16.mxu0 0
    %1024 = vmatpush1.bf16.msra.mxu0 0
    %1025 = vmatprep.subr.bf16.mxu0 0
    %1026 = vmatpush1.bf16.msra.mxu0 0
    %1027 = vmatprep.subr.bf16.mxu0 0
    %1028 = vmatpush1.bf16.msra.mxu0 0
    %1029 = vmatprep.subr.bf16.mxu0 0
    %1030 = vmatpush1.bf16.msra.mxu0 0
    %1031 = vmatprep.subr.bf16.mxu0 0
    %1032 = vmatpush1.bf16.msra.mxu0 0
    %1033 = vmatprep.subr.bf16.mxu0 0
    %1034 = vmatpush1.bf16.msra.mxu0 0
    %1035 = vmatprep.subr.bf16.mxu0 0
    %1036 = vmatpush1.bf16.msra.mxu0 0
    %1037 = vmatprep.subr.bf16.mxu0 0
    %1038 = vmatpush1.bf16.msra.mxu0 0
    %1039 = vmatprep.subr.bf16.mxu0 0
    %1040 = vmatpush1.bf16.msra.mxu0 0
    %1041 = vmatprep.subr.bf16.mxu0 0
    %1042 = vmatpush1.bf16.msra.mxu0 0
    %1043 = vmatprep.subr.bf16.mxu0 0
    %1044 = vmatpush1.bf16.msra.mxu0 0
    %1045 = vmatprep.mubr.bf16.mxu0 0
    %1046 = vmatmul.mubr.bf16.gmra.mrb[0].mxu0 %v1011
    %v1047 = vpop.f32.mrb[0].mxu0
    %v1048 = vadd.f32 %v367, %v1047
    %v1049 = vpop.f32.mrb[0].mxu0
    %v1050 = vpop.f32.mrb[0].mxu0
    %v1051 = vpop.f32.mrb[0].mxu0
    %1052 = vdwg.mxu0
    %v1054 = vcombine.high %v1048, %v1048
    %v1056 = vpack.c.bf16 %v1048, %v1048
    %v1057 = vpack.c.bf16 %v1054, %v1054
    %v1059 = vsel %vm126, %v1056, 0
    %1061 = vmatprep.subr.bf16.mxu0 0
    %1062 = vmatpush1.bf16.msra.mxu0 %v333
    %1063 = vmatprep.subr.bf16.mxu0 0
    %1064 = vmatpush1.bf16.msra.mxu0 %v334
    %1065 = vmatprep.subr.bf16.mxu0 0
    %1066 = vmatpush1.bf16.msra.mxu0 0
    %1067 = vmatprep.subr.bf16.mxu0 0
    %1068 = vmatpush1.bf16.msra.mxu0 0
    %1069 = vmatprep.subr.bf16.mxu0 0
    %1070 = vmatpush1.bf16.msra.mxu0 0
    %1071 = vmatprep.subr.bf16.mxu0 0
    %1072 = vmatpush1.bf16.msra.mxu0 0
    %1073 = vmatprep.subr.bf16.mxu0 0
    %1074 = vmatpush1.bf16.msra.mxu0 0
    %1075 = vmatprep.subr.bf16.mxu0 0
    %1076 = vmatpush1.bf16.msra.mxu0 0
    %1077 = vmatprep.subr.bf16.mxu0 0
    %1078 = vmatpush1.bf16.msra.mxu0 0
    %1079 = vmatprep.subr.bf16.mxu0 0
    %1080 = vmatpush1.bf16.msra.mxu0 0
    %1081 = vmatprep.subr.bf16.mxu0 0
    %1082 = vmatpush1.bf16.msra.mxu0 0
    %1083 = vmatprep.subr.bf16.mxu0 0
    %1084 = vmatpush1.bf16.msra.mxu0 0
    %1085 = vmatprep.subr.bf16.mxu0 0
    %1086 = vmatpush1.bf16.msra.mxu0 0
    %1087 = vmatprep.subr.bf16.mxu0 0
    %1088 = vmatpush1.bf16.msra.mxu0 0
    %1089 = vmatprep.subr.bf16.mxu0 0
    %1090 = vmatpush1.bf16.msra.mxu0 0
    %1091 = vmatprep.subr.bf16.mxu0 0
    %1092 = vmatpush1.bf16.msra.mxu0 0
    %1093 = vmatprep.mubr.bf16.mxu0 0
    %1094 = vmatmul.mubr.bf16.gmra.mrb[0].mxu0 %v1059
    %v1095 = vpop.f32.mrb[0].mxu0
    %v1096 = vadd.f32 0.0, %v1095
    %v1097 = vpop.f32.mrb[0].mxu0
    %v1098 = vpop.f32.mrb[0].mxu0
    %v1099 = vpop.f32.mrb[0].mxu0
    %1100 = vdwg.mxu0
    %v1102 = vsel %vm126, %v1057, 0
    %1104 = vmatprep.subr.bf16.mxu0 0
    %1105 = vmatpush1.bf16.msra.mxu0 %v335
    %1106 = vmatprep.subr.bf16.mxu0 0
    %1107 = vmatpush1.bf16.msra.mxu0 %v336
    %1108 = vmatprep.subr.bf16.mxu0 0
    %1109 = vmatpush1.bf16.msra.mxu0 0
    %1110 = vmatprep.subr.bf16.mxu0 0
    %1111 = vmatpush1.bf16.msra.mxu0 0
    %1112 = vmatprep.subr.bf16.mxu0 0
    %1113 = vmatpush1.bf16.msra.mxu0 0
    %1114 = vmatprep.subr.bf16.mxu0 0
    %1115 = vmatpush1.bf16.msra.mxu0 0
    %1116 = vmatprep.subr.bf16.mxu0 0
    %1117 = vmatpush1.bf16.msra.mxu0 0
    %1118 = vmatprep.subr.bf16.mxu0 0
    %1119 = vmatpush1.bf16.msra.mxu0 0
    %1120 = vmatprep.subr.bf16.mxu0 0
    %1121 = vmatpush1.bf16.msra.mxu0 0
    %1122 = vmatprep.subr.bf16.mxu0 0
    %1123 = vmatpush1.bf16.msra.mxu0 0
    %1124 = vmatprep.subr.bf16.mxu0 0
    %1125 = vmatpush1.bf16.msra.mxu0 0
    %1126 = vmatprep.subr.bf16.mxu0 0
    %1127 = vmatpush1.bf16.msra.mxu0 0
    %1128 = vmatprep.subr.bf16.mxu0 0
    %1129 = vmatpush1.bf16.msra.mxu0 0
    %1130 = vmatprep.subr.bf16.mxu0 0
    %1131 = vmatpush1.bf16.msra.mxu0 0
    %1132 = vmatprep.subr.bf16.mxu0 0
    %1133 = vmatpush1.bf16.msra.mxu0 0
    %1134 = vmatprep.subr.bf16.mxu0 0
    %1135 = vmatpush1.bf16.msra.mxu0 0
    %1136 = vmatprep.mubr.bf16.mxu0 0
    %1137 = vmatmul.mubr.bf16.gmra.mrb[0].mxu0 %v1102
    %v1138 = vpop.f32.mrb[0].mxu0
    %v1139 = vadd.f32 0.0, %v1138
    %v1140 = vpop.f32.mrb[0].mxu0
    %v1141 = vpop.f32.mrb[0].mxu0
    %v1142 = vpop.f32.mrb[0].mxu0
    %1143 = vdwg.mxu0
    %v1144 = vsel %vm514, %v1096, -inf
    %v1145 = vrot.slane %v1144, 4
    %v1146 = vmax.f32 %v1144, %v1145
    %v1147 = vrot.slane %v1146, 2
    %v1148 = vmax.f32 %v1146, %v1147
    %v1149 = vrot.slane %v1148, 1
    %v1150 = vmax.f32 %v1148, %v1149
    %v1151 = vsel %vm514, %v1139, -inf
    %v1152 = vrot.slane %v1151, 4
    %v1153 = vmax.f32 %v1151, %v1152
    %v1154 = vrot.slane %v1153, 2
    %v1155 = vmax.f32 %v1153, %v1154
    %v1156 = vrot.slane %v1155, 1
    %v1157 = vmax.f32 %v1155, %v1156
    %v1158 = vsub.f32 %v1096, %v1150
    %v1159 = vsub.f32 %v1139, %v1157
    %v1160 = vmul.f32 %v1158, 1.442695
    %v1161 = vpow.pop %v1160
    %v1162 = vmul.f32 %v1159, 1.442695
    %v1163 = vpow.pop %v1162
    %v1164 = vsel %vm514, %v1161, 0.0
    %v1165 = vrot.slane %v1164, 4
    %v1166 = vadd.f32 %v1164, %v1165
    %v1167 = vrot.slane %v1166, 2
    %v1168 = vadd.f32 %v1166, %v1167
    %v1169 = vrot.slane %v1168, 1
    %v1170 = vadd.f32 %v1168, %v1169
    %v1171 = vsel %vm514, %v1163, 0.0
    %v1172 = vrot.slane %v1171, 4
    %v1173 = vadd.f32 %v1171, %v1172
    %v1174 = vrot.slane %v1173, 2
    %v1175 = vadd.f32 %v1173, %v1174
    %v1176 = vrot.slane %v1175, 1
    %v1177 = vadd.f32 %v1175, %v1176
    %v1178 = vrcp.pop %v1170
    %v1179 = vrcp.pop %v1177
    %v1180 = vmul.f32 %v1161, %v1178
    %v1181 = vmul.f32 %v1163, %v1179
    %v1182 = vadd.f32 %v1180, 1e-08
    %v1183 = vadd.f32 %v1181, 1e-08
    %v1184 = vsel %vm514, %v1182, 0.0
    %1185 = vadd.xlane.f32.xlu0 %v1184
    %v1186 = vpop.xlane.xlu0 %1185
    %v1187 = vsel %vm514, %v1183, 0.0
    %1188 = vadd.xlane.f32.xlu0 %v1187
    %v1189 = vpop.xlane.xlu0 %1188
    %v1190 = vrcp.pop %v1186
    %v1191 = vrcp.pop %v1189
    %v1192 = vmul.f32 %v1182, %v1190
    %v1193 = vmul.f32 %v1183, %v1191
    %v1194 = vpack.c.bf16 %v1192, %v1192
    %v1195 = vpack.c.bf16 %v1193, %v1193
    %v1197 = vsel %vm571, %v1194, 0
    %1199 = vmatprep.subr.bf16.mxu0 0
    %1200 = vmatpush1.bf16.msra.mxu0 %v569
    %1201 = vmatprep.subr.bf16.mxu0 0
    %1202 = vmatpush1.bf16.msra.mxu0 0
    %1203 = vmatprep.subr.bf16.mxu0 0
    %1204 = vmatpush1.bf16.msra.mxu0 0
    %1205 = vmatprep.subr.bf16.mxu0 0
    %1206 = vmatpush1.bf16.msra.mxu0 0
    %1207 = vmatprep.subr.bf16.mxu0 0
    %1208 = vmatpush1.bf16.msra.mxu0 0
    %1209 = vmatprep.subr.bf16.mxu0 0
    %1210 = vmatpush1.bf16.msra.mxu0 0
    %1211 = vmatprep.subr.bf16.mxu0 0
    %1212 = vmatpush1.bf16.msra.mxu0 0
    %1213 = vmatprep.subr.bf16.mxu0 0
    %1214 = vmatpush1.bf16.msra.mxu0 0
    %1215 = vmatprep.subr.bf16.mxu0 0
    %1216 = vmatpush1.bf16.msra.mxu0 0
    %1217 = vmatprep.subr.bf16.mxu0 0
    %1218 = vmatpush1.bf16.msra.mxu0 0
    %1219 = vmatprep.subr.bf16.mxu0 0
    %1220 = vmatpush1.bf16.msra.mxu0 0
    %1221 = vmatprep.subr.bf16.mxu0 0
    %1222 = vmatpush1.bf16.msra.mxu0 0
    %1223 = vmatprep.subr.bf16.mxu0 0
    %1224 = vmatpush1.bf16.msra.mxu0 0
    %1225 = vmatprep.subr.bf16.mxu0 0
    %1226 = vmatpush1.bf16.msra.mxu0 0
    %1227 = vmatprep.subr.bf16.mxu0 0
    %1228 = vmatpush1.bf16.msra.mxu0 0
    %1229 = vmatprep.subr.bf16.mxu0 0
    %1230 = vmatpush1.bf16.msra.mxu0 0
    %1231 = vmatprep.mubr.bf16.mxu0 0
    %1232 = vmatmul.mubr.bf16.gmra.mrb[0].mxu0 %v1197
    %v1233 = vpop.f32.mrb[0].mxu0
    %v1234 = vadd.f32 0.0, %v1233
    %v1235 = vpop.f32.mrb[0].mxu0
    %v1236 = vpop.f32.mrb[0].mxu0
    %v1237 = vpop.f32.mrb[0].mxu0
    %1238 = vdwg.mxu0
    %v1240 = vsel %vm571, %v1195, 0
    %1242 = vmatprep.subr.bf16.mxu0 0
    %1243 = vmatpush1.bf16.msra.mxu0 %v617
    %1244 = vmatprep.subr.bf16.mxu0 0
    %1245 = vmatpush1.bf16.msra.mxu0 0
    %1246 = vmatprep.subr.bf16.mxu0 0
    %1247 = vmatpush1.bf16.msra.mxu0 0
    %1248 = vmatprep.subr.bf16.mxu0 0
    %1249 = vmatpush1.bf16.msra.mxu0 0
    %1250 = vmatprep.subr.bf16.mxu0 0
    %1251 = vmatpush1.bf16.msra.mxu0 0
    %1252 = vmatprep.subr.bf16.mxu0 0
    %1253 = vmatpush1.bf16.msra.mxu0 0
    %1254 = vmatprep.subr.bf16.mxu0 0
    %1255 = vmatpush1.bf16.msra.mxu0 0
    %1256 = vmatprep.subr.bf16.mxu0 0
    %1257 = vmatpush1.bf16.msra.mxu0 0
    %1258 = vmatprep.subr.bf16.mxu0 0
    %1259 = vmatpush1.bf16.msra.mxu0 0
    %1260 = vmatprep.subr.bf16.mxu0 0
    %1261 = vmatpush1.bf16.msra.mxu0 0
    %1262 = vmatprep.subr.bf16.mxu0 0
    %1263 = vmatpush1.bf16.msra.mxu0 0
    %1264 = vmatprep.subr.bf16.mxu0 0
    %1265 = vmatpush1.bf16.msra.mxu0 0
    %1266 = vmatprep.subr.bf16.mxu0 0
    %1267 = vmatpush1.bf16.msra.mxu0 0
    %1268 = vmatprep.subr.bf16.mxu0 0
    %1269 = vmatpush1.bf16.msra.mxu0 0
    %1270 = vmatprep.subr.bf16.mxu0 0
    %1271 = vmatpush1.bf16.msra.mxu0 0
    %1272 = vmatprep.subr.bf16.mxu0 0
    %1273 = vmatpush1.bf16.msra.mxu0 0
    %1274 = vmatprep.mubr.bf16.mxu0 0
    %1275 = vmatmul.mubr.bf16.gmra.mrb[0].mxu0 %v1240
    %v1276 = vpop.f32.mrb[0].mxu0
    %v1277 = vadd.f32 0.0, %v1276
    %v1278 = vpop.f32.mrb[0].mxu0
    %v1279 = vpop.f32.mrb[0].mxu0
    %v1280 = vpop.f32.mrb[0].mxu0
    %1281 = vdwg.mxu0
    %v1284 = vcombine.low %v1234, %v1277
    %v1286 = vsel %vm126, %v1284, %v974
    %v1287 = vpack.c.bf16 %v1286, %v1286
    %v1289 = vsel %vm700, %v1287, 0
    %1291 = vmatprep.subr.bf16.mxu0 0
    %1292 = vmatpush1.bf16.msra.mxu0 %v692
    %1293 = vmatprep.subr.bf16.mxu0 0
    %1294 = vmatpush1.bf16.msra.mxu0 %v693
    %1295 = vmatprep.subr.bf16.mxu0 0
    %1296 = vmatpush1.bf16.msra.mxu0 %v694
    %1297 = vmatprep.subr.bf16.mxu0 0
    %1298 = vmatpush1.bf16.msra.mxu0 %v695
    %1299 = vmatprep.subr.bf16.mxu0 0
    %1300 = vmatpush1.bf16.msra.mxu0 0
    %1301 = vmatprep.subr.bf16.mxu0 0
    %1302 = vmatpush1.bf16.msra.mxu0 0
    %1303 = vmatprep.subr.bf16.mxu0 0
    %1304 = vmatpush1.bf16.msra.mxu0 0
    %1305 = vmatprep.subr.bf16.mxu0 0
    %1306 = vmatpush1.bf16.msra.mxu0 0
    %1307 = vmatprep.subr.bf16.mxu0 0
    %1308 = vmatpush1.bf16.msra.mxu0 0
    %1309 = vmatprep.subr.bf16.mxu0 0
    %1310 = vmatpush1.bf16.msra.mxu0 0
    %1311 = vmatprep.subr.bf16.mxu0 0
    %1312 = vmatpush1.bf16.msra.mxu0 0
    %1313 = vmatprep.subr.bf16.mxu0 0
    %1314 = vmatpush1.bf16.msra.mxu0 0
    %1315 = vmatprep.subr.bf16.mxu0 0
    %1316 = vmatpush1.bf16.msra.mxu0 0
    %1317 = vmatprep.subr.bf16.mxu0 0
    %1318 = vmatpush1.bf16.msra.mxu0 0
    %1319 = vmatprep.subr.bf16.mxu0 0
    %1320 = vmatpush1.bf16.msra.mxu0 0
    %1321 = vmatprep.subr.bf16.mxu0 0
    %1322 = vmatpush1.bf16.msra.mxu0 0
    %1323 = vmatprep.mubr.bf16.mxu0 0
    %1324 = vmatmul.mubr.bf16.gmra.mrb[0].mxu0 %v1289
    %v1325 = vpop.f32.mrb[0].mxu0
    %v1326 = vadd.f32 %v675, %v1325
    %v1327 = vpop.f32.mrb[0].mxu0
    %v1328 = vpop.f32.mrb[0].mxu0
    %v1329 = vpop.f32.mrb[0].mxu0
    %1330 = vdwg.mxu0
    %v1331 = vxor.u32 %v1326, 2147483648
    %v1332 = vmul.f32 %v1331, 1.442695
    %v1333 = vpow.pop %v1332
    %v1334 = vadd.f32 %v1333, 1.0
    %v1335 = vrcp.pop %v1334
    %v1336 = vmul.f32 1.0, %v1335
    %1338 = vrot.lane.b32.xlu0 %v1326, 32
    %v1339 = vpop.permute.xlu0 %1338
    %v1341 = vmul.f32 %v1336, %v1339
    %1343 = vrot.lane.b32.xlu0 %v1341, 64
    %v1344 = vpop.permute.xlu0 %1343
    %v1346 = vadd.f32 %v1326, %v1344
    %v1347 = vtanh.pop %v1346
    %v1348 = vsub.f32 1.0, %v1336
    %1350 = vrot.lane.b32.xlu0 %v1347, 96
    %v1351 = vpop.permute.xlu0 %1350
    %v1353 = vmul.f32 %v1348, %v1351
    %v1354 = vmul.f32 %v1336, %v974
    %v1355 = vadd.f32 %v1353, %v1354
    %1357 = vrot.lane.b32.xlu0 %v1355, 96
    %v1358 = vpop.permute.xlu0 %1357
    %v1360 = vsel %vm126, %v1358, 0.0
    %1361 = vadd.xlane.f32.xlu0 %v1360
    %v1362 = vpop.xlane.xlu0 %1361
    %v1363 = vmul.f32 %v1362, %v139
    %v1364 = vsub.f32 %v1355, %v1363
    %v1365 = vmul.f32 %v1364, %v1364
    %1367 = vrot.lane.b32.xlu0 %v1365, 96
    %v1368 = vpop.permute.xlu0 %1367
    %v1370 = vsel %vm126, %v1368, 0.0
    %1371 = vadd.xlane.f32.xlu0 %v1370
    %v1372 = vpop.xlane.xlu0 %1371
    %v1373 = vmul.f32 %v1372, %v139
    %v1374 = vadd.f32 %v1373, 1e-05
    %v1375 = vrsqrt.pop %v1374
    %v1376 = vmul.f32 %v1364, %v1375
    %v1377 = vmul.f32 %v1376, %v796
    %v1378 = vadd.f32 %v1377, %v805
    %v1379 = vpack.c.bf16 %v1378, %v1378
    %1381 = vrot.lane.b32.xlu0 %v1379, 96
    %v1382 = vpop.permute.xlu0 %1381
    %v1384 = vsel %vm126, %v1382, 0
    %1386 = vmatprep.subr.bf16.mxu0 0
    %1387 = vmatpush1.bf16.msra.mxu0 %v824
    %1388 = vmatprep.subr.bf16.mxu0 0
    %1389 = vmatpush1.bf16.msra.mxu0 %v825
    %1390 = vmatprep.subr.bf16.mxu0 0
    %1391 = vmatpush1.bf16.msra.mxu0 0
    %1392 = vmatprep.subr.bf16.mxu0 0
    %1393 = vmatpush1.bf16.msra.mxu0 0
    %1394 = vmatprep.subr.bf16.mxu0 0
    %1395 = vmatpush1.bf16.msra.mxu0 0
    %1396 = vmatprep.subr.bf16.mxu0 0
    %1397 = vmatpush1.bf16.msra.mxu0 0
    %1398 = vmatprep.subr.bf16.mxu0 0
    %1399 = vmatpush1.bf16.msra.mxu0 0
    %1400 = vmatprep.subr.bf16.mxu0 0
    %1401 = vmatpush1.bf16.msra.mxu0 0
    %1402 = vmatprep.subr.bf16.mxu0 0
    %1403 = vmatpush1.bf16.msra.mxu0 0
    %1404 = vmatprep.subr.bf16.mxu0 0
    %1405 = vmatpush1.bf16.msra.mxu0 0
    %1406 = vmatprep.subr.bf16.mxu0 0
    %1407 = vmatpush1.bf16.msra.mxu0 0
    %1408 = vmatprep.subr.bf16.mxu0 0
    %1409 = vmatpush1.bf16.msra.mxu0 0
    %1410 = vmatprep.subr.bf16.mxu0 0
    %1411 = vmatpush1.bf16.msra.mxu0 0
    %1412 = vmatprep.subr.bf16.mxu0 0
    %1413 = vmatpush1.bf16.msra.mxu0 0
    %1414 = vmatprep.subr.bf16.mxu0 0
    %1415 = vmatpush1.bf16.msra.mxu0 0
    %1416 = vmatprep.subr.bf16.mxu0 0
    %1417 = vmatpush1.bf16.msra.mxu0 0
    %1418 = vmatprep.mubr.bf16.mxu0 0
    %1419 = vmatmul.mubr.bf16.gmra.mrb[0].mxu0 %v1384
    %v1420 = vpop.f32.mrb[0].mxu0
    %v1421 = vadd.f32 %v812, %v1420
    %v1422 = vpop.f32.mrb[0].mxu0
    %v1423 = vpop.f32.mrb[0].mxu0
    %v1424 = vpop.f32.mrb[0].mxu0
    %1425 = vdwg.mxu0
    %v1426 = vmax.f32 %v1421, 0.0
    %v1427 = vpack.c.bf16 %v1426, %v1426
    %1428 = vmatprep.subr.bf16.mxu0 0
    %1429 = vmatpush1.bf16.msra.mxu0 %v905
    %1430 = vmatprep.subr.bf16.mxu0 0
    %1431 = vmatpush1.bf16.msra.mxu0 %v906
    %1432 = vmatprep.subr.bf16.mxu0 0
    %1433 = vmatpush1.bf16.msra.mxu0 %v907
    %1434 = vmatprep.subr.bf16.mxu0 0
    %1435 = vmatpush1.bf16.msra.mxu0 %v908
    %1436 = vmatprep.subr.bf16.mxu0 0
    %1437 = vmatpush1.bf16.msra.mxu0 %v909
    %1438 = vmatprep.subr.bf16.mxu0 0
    %1439 = vmatpush1.bf16.msra.mxu0 %v910
    %1440 = vmatprep.subr.bf16.mxu0 0
    %1441 = vmatpush1.bf16.msra.mxu0 %v911
    %1442 = vmatprep.subr.bf16.mxu0 0
    %1443 = vmatpush1.bf16.msra.mxu0 %v912
    %1444 = vmatprep.subr.bf16.mxu0 0
    %1445 = vmatpush1.bf16.msra.mxu0 0
    %1446 = vmatprep.subr.bf16.mxu0 0
    %1447 = vmatpush1.bf16.msra.mxu0 0
    %1448 = vmatprep.subr.bf16.mxu0 0
    %1449 = vmatpush1.bf16.msra.mxu0 0
    %1450 = vmatprep.subr.bf16.mxu0 0
    %1451 = vmatpush1.bf16.msra.mxu0 0
    %1452 = vmatprep.subr.bf16.mxu0 0
    %1453 = vmatpush1.bf16.msra.mxu0 0
    %1454 = vmatprep.subr.bf16.mxu0 0
    %1455 = vmatpush1.bf16.msra.mxu0 0
    %1456 = vmatprep.subr.bf16.mxu0 0
    %1457 = vmatpush1.bf16.msra.mxu0 0
    %1458 = vmatprep.subr.bf16.mxu0 0
    %1459 = vmatpush1.bf16.msra.mxu0 0
    %1460 = vmatprep.mubr.bf16.mxu0 0
    %1461 = vmatmul.mubr.bf16.gmra.mrb[0].mxu0 %v1427
    %v1462 = vpop.f32.mrb[0].mxu0
    %v1463 = vadd.f32 0.0, %v1462
    %v1464 = vpop.f32.mrb[0].mxu0
    %v1465 = vpop.f32.mrb[0].mxu0
    %v1466 = vpop.f32.mrb[0].mxu0
    %1467 = vdwg.mxu0
    %1469 = vrot.lane.b32.xlu0 %v1463, 32
    %v1470 = vpop.permute.xlu0 %1469
    %v1472 = vadd.f32 %v1355, %v1470
    %v1473 = vadd.f32 %v1472, %v972
    %1475 = vrot.lane.b32.xlu0 %v1473, 96
    %v1476 = vpop.permute.xlu0 %1475
    %v1478 = vsel %vm126, %v1476, 0.0
    %1479 = vadd.xlane.f32.xlu0 %v1478
    %v1480 = vpop.xlane.xlu0 %1479
    %v1481 = vmul.f32 %v1480, %v139
    %v1482 = vsub.f32 %v1473, %v1481
    %v1483 = vmul.f32 %v1482, %v1482
    %1485 = vrot.lane.b32.xlu0 %v1483, 96
    %v1486 = vpop.permute.xlu0 %1485
    %v1488 = vsel %vm126, %v1486, 0.0
    %1489 = vadd.xlane.f32.xlu0 %v1488
    %v1490 = vpop.xlane.xlu0 %1489
    %v1491 = vmul.f32 %v1490, %v139
    %v1492 = vadd.f32 %v1491, 1e-05
    %v1493 = vrsqrt.pop %v1492
    %v1494 = vmul.f32 %v1482, %v1493
    %v1495 = vmul.f32 %v1494, %v998
    %v1496 = vadd.f32 %v1495, %v1003
    %v1497 = vpack.c.bf16 %v1496, %v1496
    %1499 = vrot.lane.b32.xlu0 %v1497, 96
    %v1500 = vpop.permute.xlu0 %1499
    %v1502 = vsel %vm126, %v1500, 0
    %1504 = vmatprep.subr.bf16.mxu0 0
    %1505 = vmatpush1.bf16.msra.mxu0 %v376
    %1506 = vmatprep.subr.bf16.mxu0 0
    %1507 = vmatpush1.bf16.msra.mxu0 %v377
    %1508 = vmatprep.subr.bf16.mxu0 0
    %1509 = vmatpush1.bf16.msra.mxu0 0
    %1510 = vmatprep.subr.bf16.mxu0 0
    %1511 = vmatpush1.bf16.msra.mxu0 0
    %1512 = vmatprep.subr.bf16.mxu0 0
    %1513 = vmatpush1.bf16.msra.mxu0 0
    %1514 = vmatprep.subr.bf16.mxu0 0
    %1515 = vmatpush1.bf16.msra.mxu0 0
    %1516 = vmatprep.subr.bf16.mxu0 0
    %1517 = vmatpush1.bf16.msra.mxu0 0
    %1518 = vmatprep.subr.bf16.mxu0 0
    %1519 = vmatpush1.bf16.msra.mxu0 0
    %1520 = vmatprep.subr.bf16.mxu0 0
    %1521 = vmatpush1.bf16.msra.mxu0 0
    %1522 = vmatprep.subr.bf16.mxu0 0
    %1523 = vmatpush1.bf16.msra.mxu0 0
    %1524 = vmatprep.subr.bf16.mxu0 0
    %1525 = vmatpush1.bf16.msra.mxu0 0
    %1526 = vmatprep.subr.bf16.mxu0 0
    %1527 = vmatpush1.bf16.msra.mxu0 0
    %1528 = vmatprep.subr.bf16.mxu0 0
    %1529 = vmatpush1.bf16.msra.mxu0 0
    %1530 = vmatprep.subr.bf16.mxu0 0
    %1531 = vmatpush1.bf16.msra.mxu0 0
    %1532 = vmatprep.subr.bf16.mxu0 0
    %1533 = vmatpush1.bf16.msra.mxu0 0
    %1534 = vmatprep.subr.bf16.mxu0 0
    %1535 = vmatpush1.bf16.msra.mxu0 0
    %1536 = vmatprep.mubr.bf16.mxu0 0
    %1537 = vmatmul.mubr.bf16.gmra.mrb[0].mxu0 %v1502
    %v1538 = vpop.f32.mrb[0].mxu0
    %v1539 = vadd.f32 %v367, %v1538
    %v1540 = vpop.f32.mrb[0].mxu0
    %v1541 = vpop.f32.mrb[0].mxu0
    %v1542 = vpop.f32.mrb[0].mxu0
    %1543 = vdwg.mxu0
    %v1545 = vcombine.high %v1539, %v1539
    %v1547 = vpack.c.bf16 %v1539, %v1539
    %v1548 = vpack.c.bf16 %v1545, %v1545
    %v1550 = vsel %vm126, %v1547, 0
    %1552 = vmatprep.subr.bf16.mxu0 0
    %1553 = vmatpush1.bf16.msra.mxu0 %v333
    %1554 = vmatprep.subr.bf16.mxu0 0
    %1555 = vmatpush1.bf16.msra.mxu0 %v334
    %1556 = vmatprep.subr.bf16.mxu0 0
    %1557 = vmatpush1.bf16.msra.mxu0 0
    %1558 = vmatprep.subr.bf16.mxu0 0
    %1559 = vmatpush1.bf16.msra.mxu0 0
    %1560 = vmatprep.subr.bf16.mxu0 0
    %1561 = vmatpush1.bf16.msra.mxu0 0
    %1562 = vmatprep.subr.bf16.mxu0 0
    %1563 = vmatpush1.bf16.msra.mxu0 0
    %1564 = vmatprep.subr.bf16.mxu0 0
    %1565 = vmatpush1.bf16.msra.mxu0 0
    %1566 = vmatprep.subr.bf16.mxu0 0
    %1567 = vmatpush1.bf16.msra.mxu0 0
    %1568 = vmatprep.subr.bf16.mxu0 0
    %1569 = vmatpush1.bf16.msra.mxu0 0
    %1570 = vmatprep.subr.bf16.mxu0 0
    %1571 = vmatpush1.bf16.msra.mxu0 0
    %1572 = vmatprep.subr.bf16.mxu0 0
    %1573 = vmatpush1.bf16.msra.mxu0 0
    %1574 = vmatprep.subr.bf16.mxu0 0
    %1575 = vmatpush1.bf16.msra.mxu0 0
    %1576 = vmatprep.subr.bf16.mxu0 0
    %1577 = vmatpush1.bf16.msra.mxu0 0
    %1578 = vmatprep.subr.bf16.mxu0 0
    %1579 = vmatpush1.bf16.msra.mxu0 0
    %1580 = vmatprep.subr.bf16.mxu0 0
    %1581 = vmatpush1.bf16.msra.mxu0 0
    %1582 = vmatprep.subr.bf16.mxu0 0
    %1583 = vmatpush1.bf16.msra.mxu0 0
    %1584 = vmatprep.mubr.bf16.mxu0 0
    %1585 = vmatmul.mubr.bf16.gmra.mrb[0].mxu0 %v1550
    %v1586 = vpop.f32.mrb[0].mxu0
    %v1587 = vadd.f32 0.0, %v1586
    %v1588 = vpop.f32.mrb[0].mxu0
    %v1589 = vpop.f32.mrb[0].mxu0
    %v1590 = vpop.f32.mrb[0].mxu0
    %1591 = vdwg.mxu0
    %v1593 = vsel %vm126, %v1548, 0
    %1595 = vmatprep.subr.bf16.mxu0 0
    %1596 = vmatpush1.bf16.msra.mxu0 %v335
    %1597 = vmatprep.subr.bf16.mxu0 0
    %1598 = vmatpush1.bf16.msra.mxu0 %v336
    %1599 = vmatprep.subr.bf16.mxu0 0
    %1600 = vmatpush1.bf16.msra.mxu0 0
    %1601 = vmatprep.subr.bf16.mxu0 0
    %1602 = vmatpush1.bf16.msra.mxu0 0
    %1603 = vmatprep.subr.bf16.mxu0 0
    %1604 = vmatpush1.bf16.msra.mxu0 0
    %1605 = vmatprep.subr.bf16.mxu0 0
    %1606 = vmatpush1.bf16.msra.mxu0 0
    %1607 = vmatprep.subr.bf16.mxu0 0
    %1608 = vmatpush1.bf16.msra.mxu0 0
    %1609 = vmatprep.subr.bf16.mxu0 0
    %1610 = vmatpush1.bf16.msra.mxu0 0
    %1611 = vmatprep.subr.bf16.mxu0 0
    %1612 = vmatpush1.bf16.msra.mxu0 0
    %1613 = vmatprep.subr.bf16.mxu0 0
    %1614 = vmatpush1.bf16.msra.mxu0 0
    %1615 = vmatprep.subr.bf16.mxu0 0
    %1616 = vmatpush1.bf16.msra.mxu0 0
    %1617 = vmatprep.subr.bf16.mxu0 0
    %1618 = vmatpush1.bf16.msra.mxu0 0
    %1619 = vmatprep.subr.bf16.mxu0 0
    %1620 = vmatpush1.bf16.msra.mxu0 0
    %1621 = vmatprep.subr.bf16.mxu0 0
    %1622 = vmatpush1.bf16.msra.mxu0 0
    %1623 = vmatprep.subr.bf16.mxu0 0
    %1624 = vmatpush1.bf16.msra.mxu0 0
    %1625 = vmatprep.subr.bf16.mxu0 0
    %1626 = vmatpush1.bf16.msra.mxu0 0
    %1627 = vmatprep.mubr.bf16.mxu0 0
    %1628 = vmatmul.mubr.bf16.gmra.mrb[0].mxu0 %v1593
    %v1629 = vpop.f32.mrb[0].mxu0
    %v1630 = vadd.f32 0.0, %v1629
    %v1631 = vpop.f32.mrb[0].mxu0
    %v1632 = vpop.f32.mrb[0].mxu0
    %v1633 = vpop.f32.mrb[0].mxu0
    %1634 = vdwg.mxu0
    %v1635 = vsel %vm514, %v1587, -inf
    %v1636 = vrot.slane %v1635, 4
    %v1637 = vmax.f32 %v1635, %v1636
    %v1638 = vrot.slane %v1637, 2
    %v1639 = vmax.f32 %v1637, %v1638
    %v1640 = vrot.slane %v1639, 1
    %v1641 = vmax.f32 %v1639, %v1640
    %v1642 = vsel %vm514, %v1630, -inf
    %v1643 = vrot.slane %v1642, 4
    %v1644 = vmax.f32 %v1642, %v1643
    %v1645 = vrot.slane %v1644, 2
    %v1646 = vmax.f32 %v1644, %v1645
    %v1647 = vrot.slane %v1646, 1
    %v1648 = vmax.f32 %v1646, %v1647
    %v1649 = vsub.f32 %v1587, %v1641
    %v1650 = vsub.f32 %v1630, %v1648
    %v1651 = vmul.f32 %v1649, 1.442695
    %v1652 = vpow.pop %v1651
    %v1653 = vmul.f32 %v1650, 1.442695
    %v1654 = vpow.pop %v1653
    %v1655 = vsel %vm514, %v1652, 0.0
    %v1656 = vrot.slane %v1655, 4
    %v1657 = vadd.f32 %v1655, %v1656
    %v1658 = vrot.slane %v1657, 2
    %v1659 = vadd.f32 %v1657, %v1658
    %v1660 = vrot.slane %v1659, 1
    %v1661 = vadd.f32 %v1659, %v1660
    %v1662 = vsel %vm514, %v1654, 0.0
    %v1663 = vrot.slane %v1662, 4
    %v1664 = vadd.f32 %v1662, %v1663
    %v1665 = vrot.slane %v1664, 2
    %v1666 = vadd.f32 %v1664, %v1665
    %v1667 = vrot.slane %v1666, 1
    %v1668 = vadd.f32 %v1666, %v1667
    %v1669 = vrcp.pop %v1661
    %v1670 = vrcp.pop %v1668
    %v1671 = vmul.f32 %v1652, %v1669
    %v1672 = vmul.f32 %v1654, %v1670
    %v1673 = vadd.f32 %v1671, 1e-08
    %v1674 = vadd.f32 %v1672, 1e-08
    %v1675 = vsel %vm514, %v1673, 0.0
    %1676 = vadd.xlane.f32.xlu0 %v1675
    %v1677 = vpop.xlane.xlu0 %1676
    %v1678 = vsel %vm514, %v1674, 0.0
    %1679 = vadd.xlane.f32.xlu0 %v1678
    %v1680 = vpop.xlane.xlu0 %1679
    %v1681 = vrcp.pop %v1677
    %v1682 = vrcp.pop %v1680
    %v1683 = vmul.f32 %v1673, %v1681
    %v1684 = vmul.f32 %v1674, %v1682
    %v1685 = vpack.c.bf16 %v1683, %v1683
    %v1686 = vpack.c.bf16 %v1684, %v1684
    %v1688 = vsel %vm571, %v1685, 0
    %1690 = vmatprep.subr.bf16.mxu0 0
    %1691 = vmatpush1.bf16.msra.mxu0 %v569
    %1692 = vmatprep.subr.bf16.mxu0 0
    %1693 = vmatpush1.bf16.msra.mxu0 0
    %1694 = vmatprep.subr.bf16.mxu0 0
    %1695 = vmatpush1.bf16.msra.mxu0 0
    %1696 = vmatprep.subr.bf16.mxu0 0
    %1697 = vmatpush1.bf16.msra.mxu0 0
    %1698 = vmatprep.subr.bf16.mxu0 0
    %1699 = vmatpush1.bf16.msra.mxu0 0
    %1700 = vmatprep.subr.bf16.mxu0 0
    %1701 = vmatpush1.bf16.msra.mxu0 0
    %1702 = vmatprep.subr.bf16.mxu0 0
    %1703 = vmatpush1.bf16.msra.mxu0 0
    %1704 = vmatprep.subr.bf16.mxu0 0
    %1705 = vmatpush1.bf16.msra.mxu0 0
    %1706 = vmatprep.subr.bf16.mxu0 0
    %1707 = vmatpush1.bf16.msra.mxu0 0
    %1708 = vmatprep.subr.bf16.mxu0 0
    %1709 = vmatpush1.bf16.msra.mxu0 0
    %1710 = vmatprep.subr.bf16.mxu0 0
    %1711 = vmatpush1.bf16.msra.mxu0 0
    %1712 = vmatprep.subr.bf16.mxu0 0
    %1713 = vmatpush1.bf16.msra.mxu0 0
    %1714 = vmatprep.subr.bf16.mxu0 0
    %1715 = vmatpush1.bf16.msra.mxu0 0
    %1716 = vmatprep.subr.bf16.mxu0 0
    %1717 = vmatpush1.bf16.msra.mxu0 0
    %1718 = vmatprep.subr.bf16.mxu0 0
    %1719 = vmatpush1.bf16.msra.mxu0 0
    %1720 = vmatprep.subr.bf16.mxu0 0
    %1721 = vmatpush1.bf16.msra.mxu0 0
    %1722 = vmatprep.mubr.bf16.mxu0 0
    %1723 = vmatmul.mubr.bf16.gmra.mrb[0].mxu0 %v1688
    %v1724 = vpop.f32.mrb[0].mxu0
    %v1725 = vadd.f32 0.0, %v1724
    %v1726 = vpop.f32.mrb[0].mxu0
    %v1727 = vpop.f32.mrb[0].mxu0
    %v1728 = vpop.f32.mrb[0].mxu0
    %1729 = vdwg.mxu0
    %v1731 = vsel %vm571, %v1686, 0
    %1733 = vmatprep.subr.bf16.mxu0 0
    %1734 = vmatpush1.bf16.msra.mxu0 %v617
    %1735 = vmatprep.subr.bf16.mxu0 0
    %1736 = vmatpush1.bf16.msra.mxu0 0
    %1737 = vmatprep.subr.bf16.mxu0 0
    %1738 = vmatpush1.bf16.msra.mxu0 0
    %1739 = vmatprep.subr.bf16.mxu0 0
    %1740 = vmatpush1.bf16.msra.mxu0 0
    %1741 = vmatprep.subr.bf16.mxu0 0
    %1742 = vmatpush1.bf16.msra.mxu0 0
    %1743 = vmatprep.subr.bf16.mxu0 0
    %1744 = vmatpush1.bf16.msra.mxu0 0
    %1745 = vmatprep.subr.bf16.mxu0 0
    %1746 = vmatpush1.bf16.msra.mxu0 0
    %1747 = vmatprep.subr.bf16.mxu0 0
    %1748 = vmatpush1.bf16.msra.mxu0 0
    %1749 = vmatprep.subr.bf16.mxu0 0
    %1750 = vmatpush1.bf16.msra.mxu0 0
    %1751 = vmatprep.subr.bf16.mxu0 0
    %1752 = vmatpush1.bf16.msra.mxu0 0
    %1753 = vmatprep.subr.bf16.mxu0 0
    %1754 = vmatpush1.bf16.msra.mxu0 0
    %1755 = vmatprep.subr.bf16.mxu0 0
    %1756 = vmatpush1.bf16.msra.mxu0 0
    %1757 = vmatprep.subr.bf16.mxu0 0
    %1758 = vmatpush1.bf16.msra.mxu0 0
    %1759 = vmatprep.subr.bf16.mxu0 0
    %1760 = vmatpush1.bf16.msra.mxu0 0
    %1761 = vmatprep.subr.bf16.mxu0 0
    %1762 = vmatpush1.bf16.msra.mxu0 0
    %1763 = vmatprep.subr.bf16.mxu0 0
    %1764 = vmatpush1.bf16.msra.mxu0 0
    %1765 = vmatprep.mubr.bf16.mxu0 0
    %1766 = vmatmul.mubr.bf16.gmra.mrb[0].mxu0 %v1731
    %v1767 = vpop.f32.mrb[0].mxu0
    %v1768 = vadd.f32 0.0, %v1767
    %v1769 = vpop.f32.mrb[0].mxu0
    %v1770 = vpop.f32.mrb[0].mxu0
    %v1771 = vpop.f32.mrb[0].mxu0
    %1772 = vdwg.mxu0
    %v1775 = vcombine.low %v1725, %v1768
    %v1777 = vsel %vm126, %v1775, %v1473
    %v1778 = vpack.c.bf16 %v1777, %v1777
    %v1780 = vsel %vm700, %v1778, 0
    %1782 = vmatprep.subr.bf16.mxu0 0
    %1783 = vmatpush1.bf16.msra.mxu0 %v692
    %1784 = vmatprep.subr.bf16.mxu0 0
    %1785 = vmatpush1.bf16.msra.mxu0 %v693
    %1786 = vmatprep.subr.bf16.mxu0 0
    %1787 = vmatpush1.bf16.msra.mxu0 %v694
    %1788 = vmatprep.subr.bf16.mxu0 0
    %1789 = vmatpush1.bf16.msra.mxu0 %v695
    %1790 = vmatprep.subr.bf16.mxu0 0
    %1791 = vmatpush1.bf16.msra.mxu0 0
    %1792 = vmatprep.subr.bf16.mxu0 0
    %1793 = vmatpush1.bf16.msra.mxu0 0
    %1794 = vmatprep.subr.bf16.mxu0 0
    %1795 = vmatpush1.bf16.msra.mxu0 0
    %1796 = vmatprep.subr.bf16.mxu0 0
    %1797 = vmatpush1.bf16.msra.mxu0 0
    %1798 = vmatprep.subr.bf16.mxu0 0
    %1799 = vmatpush1.bf16.msra.mxu0 0
    %1800 = vmatprep.subr.bf16.mxu0 0
    %1801 = vmatpush1.bf16.msra.mxu0 0
    %1802 = vmatprep.subr.bf16.mxu0 0
    %1803 = vmatpush1.bf16.msra.mxu0 0
    %1804 = vmatprep.subr.bf16.mxu0 0
    %1805 = vmatpush1.bf16.msra.mxu0 0
    %1806 = vmatprep.subr.bf16.mxu0 0
    %1807 = vmatpush1.bf16.msra.mxu0 0
    %1808 = vmatprep.subr.bf16.mxu0 0
    %1809 = vmatpush1.bf16.msra.mxu0 0
    %1810 = vmatprep.subr.bf16.mxu0 0
    %1811 = vmatpush1.bf16.msra.mxu0 0
    %1812 = vmatprep.subr.bf16.mxu0 0
    %1813 = vmatpush1.bf16.msra.mxu0 0
    %1814 = vmatprep.mubr.bf16.mxu0 0
    %1815 = vmatmul.mubr.bf16.gmra.mrb[0].mxu0 %v1780
    %v1816 = vpop.f32.mrb[0].mxu0
    %v1817 = vadd.f32 %v675, %v1816
    %v1818 = vpop.f32.mrb[0].mxu0
    %v1819 = vpop.f32.mrb[0].mxu0
    %v1820 = vpop.f32.mrb[0].mxu0
    %1821 = vdwg.mxu0
    %v1822 = vxor.u32 %v1817, 2147483648
    %v1823 = vmul.f32 %v1822, 1.442695
    %v1824 = vpow.pop %v1823
    %v1825 = vadd.f32 %v1824, 1.0
    %v1826 = vrcp.pop %v1825
    %v1827 = vmul.f32 1.0, %v1826
    %1829 = vrot.lane.b32.xlu0 %v1817, 32
    %v1830 = vpop.permute.xlu0 %1829
    %v1832 = vmul.f32 %v1827, %v1830
    %1834 = vrot.lane.b32.xlu0 %v1832, 64
    %v1835 = vpop.permute.xlu0 %1834
    %v1837 = vadd.f32 %v1817, %v1835
    %v1838 = vtanh.pop %v1837
    %v1839 = vsub.f32 1.0, %v1827
    %1841 = vrot.lane.b32.xlu0 %v1838, 96
    %v1842 = vpop.permute.xlu0 %1841
    %v1844 = vmul.f32 %v1839, %v1842
    %v1845 = vmul.f32 %v1827, %v1473
    %v1846 = vadd.f32 %v1844, %v1845
    %1848 = vrot.lane.b32.xlu0 %v1846, 96
    %v1849 = vpop.permute.xlu0 %1848
    %v1851 = vsel %vm126, %v1849, 0.0
    %1852 = vadd.xlane.f32.xlu0 %v1851
    %v1853 = vpop.xlane.xlu0 %1852
    %v1854 = vmul.f32 %v1853, %v139
    %v1855 = vsub.f32 %v1846, %v1854
    %v1856 = vmul.f32 %v1855, %v1855
    %1858 = vrot.lane.b32.xlu0 %v1856, 96
    %v1859 = vpop.permute.xlu0 %1858
    %v1861 = vsel %vm126, %v1859, 0.0
    %1862 = vadd.xlane.f32.xlu0 %v1861
    %v1863 = vpop.xlane.xlu0 %1862
    %v1864 = vmul.f32 %v1863, %v139
    %v1865 = vadd.f32 %v1864, 1e-05
    %v1866 = vrsqrt.pop %v1865
    %v1867 = vmul.f32 %v1855, %v1866
    %v1868 = vmul.f32 %v1867, %v796
    %v1869 = vadd.f32 %v1868, %v805
    %v1870 = vpack.c.bf16 %v1869, %v1869
    %1872 = vrot.lane.b32.xlu0 %v1870, 96
    %v1873 = vpop.permute.xlu0 %1872
    %v1875 = vsel %vm126, %v1873, 0
    %1877 = vmatprep.subr.bf16.mxu0 0
    %1878 = vmatpush1.bf16.msra.mxu0 %v824
    %1879 = vmatprep.subr.bf16.mxu0 0
    %1880 = vmatpush1.bf16.msra.mxu0 %v825
    %1881 = vmatprep.subr.bf16.mxu0 0
    %1882 = vmatpush1.bf16.msra.mxu0 0
    %1883 = vmatprep.subr.bf16.mxu0 0
    %1884 = vmatpush1.bf16.msra.mxu0 0
    %1885 = vmatprep.subr.bf16.mxu0 0
    %1886 = vmatpush1.bf16.msra.mxu0 0
    %1887 = vmatprep.subr.bf16.mxu0 0
    %1888 = vmatpush1.bf16.msra.mxu0 0
    %1889 = vmatprep.subr.bf16.mxu0 0
    %1890 = vmatpush1.bf16.msra.mxu0 0
    %1891 = vmatprep.subr.bf16.mxu0 0
    %1892 = vmatpush1.bf16.msra.mxu0 0
    %1893 = vmatprep.subr.bf16.mxu0 0
    %1894 = vmatpush1.bf16.msra.mxu0 0
    %1895 = vmatprep.subr.bf16.mxu0 0
    %1896 = vmatpush1.bf16.msra.mxu0 0
    %1897 = vmatprep.subr.bf16.mxu0 0
    %1898 = vmatpush1.bf16.msra.mxu0 0
    %1899 = vmatprep.subr.bf16.mxu0 0
    %1900 = vmatpush1.bf16.msra.mxu0 0
    %1901 = vmatprep.subr.bf16.mxu0 0
    %1902 = vmatpush1.bf16.msra.mxu0 0
    %1903 = vmatprep.subr.bf16.mxu0 0
    %1904 = vmatpush1.bf16.msra.mxu0 0
    %1905 = vmatprep.subr.bf16.mxu0 0
    %1906 = vmatpush1.bf16.msra.mxu0 0
    %1907 = vmatprep.subr.bf16.mxu0 0
    %1908 = vmatpush1.bf16.msra.mxu0 0
    %1909 = vmatprep.mubr.bf16.mxu0 0
    %1910 = vmatmul.mubr.bf16.gmra.mrb[0].mxu0 %v1875
    %v1911 = vpop.f32.mrb[0].mxu0
    %v1912 = vadd.f32 %v812, %v1911
    %v1913 = vpop.f32.mrb[0].mxu0
    %v1914 = vpop.f32.mrb[0].mxu0
    %v1915 = vpop.f32.mrb[0].mxu0
    %1916 = vdwg.mxu0
    %v1917 = vmax.f32 %v1912, 0.0
    %v1918 = vpack.c.bf16 %v1917, %v1917
    %1919 = vmatprep.subr.bf16.mxu0 0
    %1920 = vmatpush1.bf16.msra.mxu0 %v905
    %1921 = vmatprep.subr.bf16.mxu0 0
    %1922 = vmatpush1.bf16.msra.mxu0 %v906
    %1923 = vmatprep.subr.bf16.mxu0 0
    %1924 = vmatpush1.bf16.msra.mxu0 %v907
    %1925 = vmatprep.subr.bf16.mxu0 0
    %1926 = vmatpush1.bf16.msra.mxu0 %v908
    %1927 = vmatprep.subr.bf16.mxu0 0
    %1928 = vmatpush1.bf16.msra.mxu0 %v909
    %1929 = vmatprep.subr.bf16.mxu0 0
    %1930 = vmatpush1.bf16.msra.mxu0 %v910
    %1931 = vmatprep.subr.bf16.mxu0 0
    %1932 = vmatpush1.bf16.msra.mxu0 %v911
    %1933 = vmatprep.subr.bf16.mxu0 0
    %1934 = vmatpush1.bf16.msra.mxu0 %v912
    %1935 = vmatprep.subr.bf16.mxu0 0
    %1936 = vmatpush1.bf16.msra.mxu0 0
    %1937 = vmatprep.subr.bf16.mxu0 0
    %1938 = vmatpush1.bf16.msra.mxu0 0
    %1939 = vmatprep.subr.bf16.mxu0 0
    %1940 = vmatpush1.bf16.msra.mxu0 0
    %1941 = vmatprep.subr.bf16.mxu0 0
    %1942 = vmatpush1.bf16.msra.mxu0 0
    %1943 = vmatprep.subr.bf16.mxu0 0
    %1944 = vmatpush1.bf16.msra.mxu0 0
    %1945 = vmatprep.subr.bf16.mxu0 0
    %1946 = vmatpush1.bf16.msra.mxu0 0
    %1947 = vmatprep.subr.bf16.mxu0 0
    %1948 = vmatpush1.bf16.msra.mxu0 0
    %1949 = vmatprep.subr.bf16.mxu0 0
    %1950 = vmatpush1.bf16.msra.mxu0 0
    %1951 = vmatprep.mubr.bf16.mxu0 0
    %1952 = vmatmul.mubr.bf16.gmra.mrb[0].mxu0 %v1918
    %v1953 = vpop.f32.mrb[0].mxu0
    %v1954 = vadd.f32 0.0, %v1953
    %v1955 = vpop.f32.mrb[0].mxu0
    %v1956 = vpop.f32.mrb[0].mxu0
    %v1957 = vpop.f32.mrb[0].mxu0
    %1958 = vdwg.mxu0
    %1960 = vrot.lane.b32.xlu0 %v1954, 32
    %v1961 = vpop.permute.xlu0 %1960
    %v1963 = vadd.f32 %v1846, %v1961
    %v1964 = vadd.f32 %v1963, %v972
    %1966 = vrot.lane.b32.xlu0 %v1964, 96
    %v1967 = vpop.permute.xlu0 %1966
    %1969 = vst.msk [vmem:[#allocation10] sm:$0xff] %vm126, %v1967
    // Predicated region
    $region50: #{tpu_custom_call.1} parent=1 // pred_check
      _
    $region51: #{tpu_custom_call.1} parent=1 // pred_check_branch
      %1971 = sbr.rel (0) target = $region53
    $region52: #{tpu_custom_call.1} parent=1 // pred_region
      %s1973 = ssub.s32 128, 128
      %1974 = vsyncadd [#allocation4], %s1973
      %s1976 = sshll.u32 [#allocation10], 4
      %s1977 = int_to_ptr.vmem [resolvable:$true] %s1976
      %1979 = dma.vmem_to_hbm [thread:$0]  %s1977, 128, %s8, [#allocation4]
    $region53: #{tpu_custom_call.1} parent=1 // pred_fallthru
      _
    // Predicated region
    $region54: #{tpu_custom_call.1} parent=1 // pred_check
      _
    $region55: #{tpu_custom_call.1} parent=1 // pred_check_branch
      %1981 = sbr.rel (0) target = $region57
    $region56: #{tpu_custom_call.1} parent=1 // pred_region
      %1982 = dma.done [#allocation4], 128
    $region57: #{tpu_custom_call.1} parent=1 // pred_fallthru
      _
    %1983 = vsyncpa [#allocation3], 1
    %1984 = vsyncpa [#allocation6], 1
    %1985 = vsyncpa [#allocation9], 1
    %1986 = vsyncpa [#allocation4], 1

</llo_original>
